<compile_context>
chip_gen: v7x
topology: tpu7x:2x2x1
jax: 0.10.0
libtpu: 0.0.40
codegen_flags: <defaults>
</compile_context>

<pallas_src>
import functools

import jax
import jax.numpy as jnp
from jax import lax
from jax.experimental import pallas as pl
from jax.experimental.pallas import tpu as pltpu


def light_attention_kernel(x_ref, wfa_ref, bfa_ref, wig_ref, big_ref,
                           out_ref, xpad_ref, *, kernel_size):
    K = kernel_size
    pad = K // 2
    TB, L, E = x_ref.shape
    Lp = L + 2 * pad
    D = out_ref.shape[-1]

    x = x_ref[...]                                      # (TB, L, E) f32

    # --- zero-pad the (bf16) activations into VMEM scratch -------------------
    xpad_ref[:, 0:pad, :] = jnp.zeros((TB, pad, E), jnp.bfloat16)
    xpad_ref[:, pad + L:Lp, :] = jnp.zeros((TB, pad, E), jnp.bfloat16)
    xpad_ref[:, pad:pad + L, :] = x.astype(jnp.bfloat16)

    # --- fused feature+attention Conv1d: K taps of one bf16 matmul -----------
    acc = jnp.broadcast_to(bfa_ref[...], (TB * L, 2 * E)).astype(jnp.float32)
    for k in range(K):                                  # static unroll over taps
        xs = xpad_ref[:, k:k + L, :].reshape(TB * L, E)
        acc = acc + jnp.dot(xs, wfa_ref[k],
                            preferred_element_type=jnp.float32)
    acc = acc.reshape(TB, L, 2 * E)
    o = acc[:, :, :E]                                   # feature conv output
    att = acc[:, :, E:]                                 # attention conv output

    # TODO(synk): nn.Dropout(conv_dropout) is identity at inference time.

    # --- padding mask from the *pre-cast* f32 input (channel 0 != 0) ---------
    mask = x[:, :, 0:1] != 0.0                          # (TB, L, 1)
    att = jnp.where(mask, att, jnp.float32(-1e9))

    # --- softmax over the sequence axis (axis 1), reciprocal folded into o1 --
    m = jnp.max(att, axis=1, keepdims=True)             # (TB, 1, E)
    p = jnp.exp(att - m)
    s = jnp.sum(p, axis=1, keepdims=True)               # (TB, 1, E)
    inv = pl.reciprocal(s, approx=True)[:, 0, :]        # (TB, E)

    o1 = jnp.sum(o * p, axis=1) * inv                   # (TB, E)
    o2 = jnp.max(o, axis=1)                             # (TB, E)

    # --- fused gated FFN head (no lane concatenate: split the fused weight) --
    head = (jnp.dot(o1.astype(jnp.bfloat16), wig_ref[0:E, :],
                    preferred_element_type=jnp.float32)
            + jnp.dot(o2.astype(jnp.bfloat16), wig_ref[E:2 * E, :],
                      preferred_element_type=jnp.float32)
            + big_ref[...])                             # (TB, 2D)
    info = head[:, :D]
    gate = jax.nn.sigmoid(head[:, D:])
    out_ref[...] = (info * gate).astype(out_ref.dtype)


def light_attention_forward(x, params, kernel_size=9, batch_tile=None):
    """x: [B, E, L] float32 (PyTorch NCL conv layout). Returns [B, d_model]."""
    B, E, L = x.shape
    K = kernel_size
    pad = K // 2
    Lp = L + 2 * pad
    D = params["bi"].shape[-1]

    # Batch tile: full batch if small, else a multiple of 8 (sublane-friendly
    # output block).  On v7x keep at least 2 grid steps when B allows it.
    if batch_tile is None:
        batch_tile = B if B <= 8 else 8
    TB = batch_tile
    Bp = ((B + TB - 1) // TB) * TB

    # Wrapper layout glue: [B, E, L] -> [B, L, E] (no HBM-side zero padding).
    xt = jnp.transpose(x, (0, 2, 1)).astype(jnp.float32)
    if Bp != B:
        xt = jnp.pad(xt, ((0, Bp - B), (0, 0), (0, 0)))

    # Fused conv weights (K, E_in, 2E): lanes [0:E] feature, [E:2E] attention.
    wf_t = jnp.transpose(params["wf"], (2, 1, 0))
    wa_t = jnp.transpose(params["wa"], (2, 1, 0))
    wfa = jnp.concatenate([wf_t, wa_t], axis=2).astype(jnp.bfloat16)
    bfa = jnp.concatenate([params["bf"], params["ba"]])[None, :].astype(jnp.float32)

    # Fused head weights (2E, 2D): columns [0:D] information, [D:2D] gate.
    wig = jnp.concatenate([params["wi"].T, params["wg"].T],
                          axis=1).astype(jnp.bfloat16)
    big = jnp.concatenate([params["bi"], params["bg"]])[None, :].astype(jnp.float32)

    kern = functools.partial(light_attention_kernel, kernel_size=K)

    out = pl.pallas_call(
        kern,
        out_shape=jax.ShapeDtypeStruct((Bp, D), jnp.float32),
        grid_spec=pltpu.PrefetchScalarGridSpec(
            num_scalar_prefetch=0,
            grid=(Bp // TB,),
            in_specs=[
                pl.BlockSpec((TB, L, E), lambda b: (b, 0, 0)),       # activations
                pl.BlockSpec((K, E, 2 * E), lambda b: (0, 0, 0)),    # fused conv W
                pl.BlockSpec((1, 2 * E), lambda b: (0, 0)),          # fused conv b
                pl.BlockSpec((2 * E, 2 * D), lambda b: (0, 0)),      # fused head W
                pl.BlockSpec((1, 2 * D), lambda b: (0, 0)),          # fused head b
            ],
            out_specs=pl.BlockSpec((TB, D), lambda b: (b, 0)),
            scratch_shapes=[pltpu.VMEM((TB, Lp, E), jnp.bfloat16)],
        ),
        compiler_params=pltpu.CompilerParams(
            dimension_semantics=("parallel",),
            vmem_limit_bytes=32 * 1024 * 1024),
    )(xt, wfa, bfa, wig, big)

    return out[:B]


def light_attention_reference(x, params, kernel_size=9):
    """Pure-JAX f32 reference matching the PyTorch forward (eval mode)."""
    pad = kernel_size // 2
    dn = lax.conv_dimension_numbers(x.shape, params["wf"].shape,
                                    ("NCH", "OIH", "NCH"))
    o = lax.conv_general_dilated(x, params["wf"], (1,), [(pad, pad)],
                                 dimension_numbers=dn) + params["bf"][None, :, None]
    att = lax.conv_general_dilated(x, params["wa"], (1,), [(pad, pad)],
                                   dimension_numbers=dn) + params["ba"][None, :, None]
    mask = x[:, 0, :] != 0
    att = jnp.where(mask[:, None, :], att, -1e9)
    soft = jax.nn.softmax(att, axis=-1)
    o1 = jnp.sum(o * soft, axis=-1)
    o2 = jnp.max(o, axis=-1)
    ocat = jnp.concatenate([o1, o2], axis=-1)
    gate = jax.nn.sigmoid(ocat @ params["wg"].T + params["bg"])
    info = ocat @ params["wi"].T + params["bi"]
    return info * gate


def init_params(key, embeddings_dim, d_model, kernel_size):
    """Deterministic init mimicking PyTorch default uniform(-1/sqrt(fan_in), ...)."""
    E, D, K = embeddings_dim, d_model, kernel_size
    ks = jax.random.split(key, 8)
    conv_b = 1.0 / jnp.sqrt(E * K)
    lin_b = 1.0 / jnp.sqrt(2 * E)
    u = lambda k, shp, b: jax.random.uniform(k, shp, jnp.float32, -b, b)
    return {
        "wf": u(ks[0], (E, E, K), conv_b), "bf": u(ks[1], (E,), conv_b),
        "wa": u(ks[2], (E, E, K), conv_b), "ba": u(ks[3], (E,), conv_b),
        "wi": u(ks[4], (D, 2 * E), lin_b), "bi": u(ks[5], (D,), lin_b),
        "wg": u(ks[6], (D, 2 * E), lin_b), "bg": u(ks[7], (D,), lin_b),
    }


if __name__ == "__main__":
    B, E, L = 2, 32, 16          # batch, embeddings_dim, sequence_length
    D, K = 32, 9                 # d_model, kernel_size

    root = jax.random.PRNGKey(0)
    kx, kp = jax.random.split(root)
    params = init_params(kp, E, D, K)

    x = jax.random.normal(kx, (B, E, L), jnp.float32)
    # Introduce zero padding at the tail of batch element 1 so the mask matters.
    x = x.at[1, :, L - 4:].set(0.0)

    out = light_attention_forward(x, params, kernel_size=K)
    out = jax.block_until_ready(out)

    ref = light_attention_reference(x, params, kernel_size=K)
    assert out.shape == (B, D)
    # bf16 MXU matmuls (f32 accumulation) vs a pure-f32 reference: expect ~1e-2
    # absolute agreement at these magnitudes.
    assert jnp.allclose(out, ref, rtol=5e-2, atol=5e-2), (
        f"max abs diff {jnp.max(jnp.abs(out - ref))}")

    print("KERNEL_OK")
</pallas_src>

<mosaic_0001>
module attributes {stable_mosaic.version = 11 : i64} {
  func.func @light_attention_kernel(%arg0: i32, %arg1: memref<2x16x32xf32, #tpu.memory_space<vmem>>, %arg2: memref<9x32x64xbf16, #tpu.memory_space<vmem>>, %arg3: memref<1x64xf32, #tpu.memory_space<vmem>>, %arg4: memref<64x64xbf16, #tpu.memory_space<vmem>>, %arg5: memref<1x64xf32, #tpu.memory_space<vmem>>, %arg6: memref<2x32xf32, #tpu.memory_space<vmem>>, %arg7: memref<2x24x32xbf16, #tpu.memory_space<vmem>>) attributes {dimension_semantics = [#tpu.dimension_semantics<parallel>], iteration_bounds = array<i64: 1>, scalar_prefetch = 0 : i64, scratch_operands = 1 : i64, tpu.core_type = #tpu.core_type<tc>, window_params = [{transform_indices = @transform_0, window_bounds = array<i64: 2, 16, 32>}, {pipeline_mode = #tpu.pipeline_mode<synchronous>, transform_indices = @transform_1, window_bounds = array<i64: 9, 32, 64>}, {pipeline_mode = #tpu.pipeline_mode<synchronous>, transform_indices = @transform_2, window_bounds = array<i64: 1, 64>}, {pipeline_mode = #tpu.pipeline_mode<synchronous>, transform_indices = @transform_3, window_bounds = array<i64: 64, 64>}, {pipeline_mode = #tpu.pipeline_mode<synchronous>, transform_indices = @transform_4, window_bounds = array<i64: 1, 64>}, {transform_indices = @transform_5, window_bounds = array<i64: 2, 32>}]} {
    %c0 = arith.constant 0 : index
    %c0_0 = arith.constant 0 : index
    %c0_1 = arith.constant 0 : index
    %0 = vector.load %arg1[%c0, %c0_0, %c0_1] : memref<2x16x32xf32, #tpu.memory_space<vmem>>, vector<2x16x32xf32>
    %cst = arith.constant 0.000000e+00 : bf16
    %1 = vector.broadcast %cst : bf16 to vector<2x4x32xbf16>
    %c0_2 = arith.constant 0 : index
    %c0_3 = arith.constant 0 : index
    %c0_4 = arith.constant 0 : index
    %2 = vector.load %arg7[%c0_2, %c0_3, %c0_4] : memref<2x24x32xbf16, #tpu.memory_space<vmem>>, vector<2x4x32xbf16>
    tpu.vector_store %arg7[%c0_2, %c0_3, %c0_4], %1 {strides = array<i32>} : memref<2x24x32xbf16, #tpu.memory_space<vmem>>, vector<2x4x32xbf16>,
    %cst_5 = arith.constant 0.000000e+00 : bf16
    %3 = vector.broadcast %cst_5 : bf16 to vector<2x4x32xbf16>
    %c0_6 = arith.constant 0 : index
    %c20 = arith.constant 20 : index
    %c0_7 = arith.constant 0 : index
    %4 = vector.load %arg7[%c0_6, %c20, %c0_7] : memref<2x24x32xbf16, #tpu.memory_space<vmem>>, vector<2x4x32xbf16>
    tpu.vector_store %arg7[%c0_6, %c20, %c0_7], %3 {strides = array<i32>} : memref<2x24x32xbf16, #tpu.memory_space<vmem>>, vector<2x4x32xbf16>,
    %5 = arith.truncf %0 : vector<2x16x32xf32> to vector<2x16x32xbf16>
    %c0_8 = arith.constant 0 : index
    %c4 = arith.constant 4 : index
    %c0_9 = arith.constant 0 : index
    %6 = vector.load %arg7[%c0_8, %c4, %c0_9] : memref<2x24x32xbf16, #tpu.memory_space<vmem>>, vector<2x16x32xbf16>
    tpu.vector_store %arg7[%c0_8, %c4, %c0_9], %5 {strides = array<i32>} : memref<2x24x32xbf16, #tpu.memory_space<vmem>>, vector<2x16x32xbf16>,
    %c0_10 = arith.constant 0 : index
    %c0_11 = arith.constant 0 : index
    %7 = vector.load %arg3[%c0_10, %c0_11] : memref<1x64xf32, #tpu.memory_space<vmem>>, vector<1x64xf32>
    %8 = vector.shape_cast %7 : vector<1x64xf32> to vector<1x64xf32>
    %9 = vector.broadcast %8 : vector<1x64xf32> to vector<32x64xf32>
    %c0_12 = arith.constant 0 : index
    %c0_13 = arith.constant 0 : index
    %c0_14 = arith.constant 0 : index
    %10 = vector.load %arg7[%c0_12, %c0_13, %c0_14] : memref<2x24x32xbf16, #tpu.memory_space<vmem>>, vector<2x16x32xbf16>
    %11 = vector.shape_cast %10 : vector<2x16x32xbf16> to vector<32x32xbf16>
    %c0_15 = arith.constant 0 : index
    %c0_16 = arith.constant 0 : index
    %c0_17 = arith.constant 0 : index
    %12 = vector.load %arg2[%c0_15, %c0_16, %c0_17] : memref<9x32x64xbf16, #tpu.memory_space<vmem>>, vector<1x32x64xbf16>
    %13 = vector.shape_cast %12 : vector<1x32x64xbf16> to vector<32x64xbf16>
    %cst_18 = arith.constant dense<0.000000e+00> : vector<32x64xf32>
    %14 = tpu.matmul %11, %13, %cst_18 {dimension_numbers = #tpu.dot_dimension_numbers<[1], [0], [0], [1], [0, 0, 1, 1], [], []>} : vector<32x32xbf16>, vector<32x64xbf16>, vector<32x64xf32> -> vector<32x64xf32>
    %15 = arith.addf %9, %14 : vector<32x64xf32>
    %c0_19 = arith.constant 0 : index
    %c1 = arith.constant 1 : index
    %c0_20 = arith.constant 0 : index
    %16 = vector.load %arg7[%c0_19, %c1, %c0_20] : memref<2x24x32xbf16, #tpu.memory_space<vmem>>, vector<2x16x32xbf16>
    %17 = vector.shape_cast %16 : vector<2x16x32xbf16> to vector<32x32xbf16>
    %c1_21 = arith.constant 1 : index
    %c0_22 = arith.constant 0 : index
    %c0_23 = arith.constant 0 : index
    %18 = vector.load %arg2[%c1_21, %c0_22, %c0_23] : memref<9x32x64xbf16, #tpu.memory_space<vmem>>, vector<1x32x64xbf16>
    %19 = vector.shape_cast %18 : vector<1x32x64xbf16> to vector<32x64xbf16>
    %cst_24 = arith.constant dense<0.000000e+00> : vector<32x64xf32>
    %20 = tpu.matmul %17, %19, %cst_24 {dimension_numbers = #tpu.dot_dimension_numbers<[1], [0], [0], [1], [0, 0, 1, 1], [], []>} : vector<32x32xbf16>, vector<32x64xbf16>, vector<32x64xf32> -> vector<32x64xf32>
    %21 = arith.addf %15, %20 : vector<32x64xf32>
    %c0_25 = arith.constant 0 : index
    %c2 = arith.constant 2 : index
    %c0_26 = arith.constant 0 : index
    %22 = vector.load %arg7[%c0_25, %c2, %c0_26] : memref<2x24x32xbf16, #tpu.memory_space<vmem>>, vector<2x16x32xbf16>
    %23 = vector.shape_cast %22 : vector<2x16x32xbf16> to vector<32x32xbf16>
    %c2_27 = arith.constant 2 : index
    %c0_28 = arith.constant 0 : index
    %c0_29 = arith.constant 0 : index
    %24 = vector.load %arg2[%c2_27, %c0_28, %c0_29] : memref<9x32x64xbf16, #tpu.memory_space<vmem>>, vector<1x32x64xbf16>
    %25 = vector.shape_cast %24 : vector<1x32x64xbf16> to vector<32x64xbf16>
    %cst_30 = arith.constant dense<0.000000e+00> : vector<32x64xf32>
    %26 = tpu.matmul %23, %25, %cst_30 {dimension_numbers = #tpu.dot_dimension_numbers<[1], [0], [0], [1], [0, 0, 1, 1], [], []>} : vector<32x32xbf16>, vector<32x64xbf16>, vector<32x64xf32> -> vector<32x64xf32>
    %27 = arith.addf %21, %26 : vector<32x64xf32>
    %c0_31 = arith.constant 0 : index
    %c3 = arith.constant 3 : index
    %c0_32 = arith.constant 0 : index
    %28 = vector.load %arg7[%c0_31, %c3, %c0_32] : memref<2x24x32xbf16, #tpu.memory_space<vmem>>, vector<2x16x32xbf16>
    %29 = vector.shape_cast %28 : vector<2x16x32xbf16> to vector<32x32xbf16>
    %c3_33 = arith.constant 3 : index
    %c0_34 = arith.constant 0 : index
    %c0_35 = arith.constant 0 : index
    %30 = vector.load %arg2[%c3_33, %c0_34, %c0_35] : memref<9x32x64xbf16, #tpu.memory_space<vmem>>, vector<1x32x64xbf16>
    %31 = vector.shape_cast %30 : vector<1x32x64xbf16> to vector<32x64xbf16>
    %cst_36 = arith.constant dense<0.000000e+00> : vector<32x64xf32>
    %32 = tpu.matmul %29, %31, %cst_36 {dimension_numbers = #tpu.dot_dimension_numbers<[1], [0], [0], [1], [0, 0, 1, 1], [], []>} : vector<32x32xbf16>, vector<32x64xbf16>, vector<32x64xf32> -> vector<32x64xf32>
    %33 = arith.addf %27, %32 : vector<32x64xf32>
    %c0_37 = arith.constant 0 : index
    %c4_38 = arith.constant 4 : index
    %c0_39 = arith.constant 0 : index
    %34 = vector.load %arg7[%c0_37, %c4_38, %c0_39] : memref<2x24x32xbf16, #tpu.memory_space<vmem>>, vector<2x16x32xbf16>
    %35 = vector.shape_cast %34 : vector<2x16x32xbf16> to vector<32x32xbf16>
    %c4_40 = arith.constant 4 : index
    %c0_41 = arith.constant 0 : index
    %c0_42 = arith.constant 0 : index
    %36 = vector.load %arg2[%c4_40, %c0_41, %c0_42] : memref<9x32x64xbf16, #tpu.memory_space<vmem>>, vector<1x32x64xbf16>
    %37 = vector.shape_cast %36 : vector<1x32x64xbf16> to vector<32x64xbf16>
    %cst_43 = arith.constant dense<0.000000e+00> : vector<32x64xf32>
    %38 = tpu.matmul %35, %37, %cst_43 {dimension_numbers = #tpu.dot_dimension_numbers<[1], [0], [0], [1], [0, 0, 1, 1], [], []>} : vector<32x32xbf16>, vector<32x64xbf16>, vector<32x64xf32> -> vector<32x64xf32>
    %39 = arith.addf %33, %38 : vector<32x64xf32>
    %c0_44 = arith.constant 0 : index
    %c5 = arith.constant 5 : index
    %c0_45 = arith.constant 0 : index
    %40 = vector.load %arg7[%c0_44, %c5, %c0_45] : memref<2x24x32xbf16, #tpu.memory_space<vmem>>, vector<2x16x32xbf16>
    %41 = vector.shape_cast %40 : vector<2x16x32xbf16> to vector<32x32xbf16>
    %c5_46 = arith.constant 5 : index
    %c0_47 = arith.constant 0 : index
    %c0_48 = arith.constant 0 : index
    %42 = vector.load %arg2[%c5_46, %c0_47, %c0_48] : memref<9x32x64xbf16, #tpu.memory_space<vmem>>, vector<1x32x64xbf16>
    %43 = vector.shape_cast %42 : vector<1x32x64xbf16> to vector<32x64xbf16>
    %cst_49 = arith.constant dense<0.000000e+00> : vector<32x64xf32>
    %44 = tpu.matmul %41, %43, %cst_49 {dimension_numbers = #tpu.dot_dimension_numbers<[1], [0], [0], [1], [0, 0, 1, 1], [], []>} : vector<32x32xbf16>, vector<32x64xbf16>, vector<32x64xf32> -> vector<32x64xf32>
    %45 = arith.addf %39, %44 : vector<32x64xf32>
    %c0_50 = arith.constant 0 : index
    %c6 = arith.constant 6 : index
    %c0_51 = arith.constant 0 : index
    %46 = vector.load %arg7[%c0_50, %c6, %c0_51] : memref<2x24x32xbf16, #tpu.memory_space<vmem>>, vector<2x16x32xbf16>
    %47 = vector.shape_cast %46 : vector<2x16x32xbf16> to vector<32x32xbf16>
    %c6_52 = arith.constant 6 : index
    %c0_53 = arith.constant 0 : index
    %c0_54 = arith.constant 0 : index
    %48 = vector.load %arg2[%c6_52, %c0_53, %c0_54] : memref<9x32x64xbf16, #tpu.memory_space<vmem>>, vector<1x32x64xbf16>
    %49 = vector.shape_cast %48 : vector<1x32x64xbf16> to vector<32x64xbf16>
    %cst_55 = arith.constant dense<0.000000e+00> : vector<32x64xf32>
    %50 = tpu.matmul %47, %49, %cst_55 {dimension_numbers = #tpu.dot_dimension_numbers<[1], [0], [0], [1], [0, 0, 1, 1], [], []>} : vector<32x32xbf16>, vector<32x64xbf16>, vector<32x64xf32> -> vector<32x64xf32>
    %51 = arith.addf %45, %50 : vector<32x64xf32>
    %c0_56 = arith.constant 0 : index
    %c7 = arith.constant 7 : index
    %c0_57 = arith.constant 0 : index
    %52 = vector.load %arg7[%c0_56, %c7, %c0_57] : memref<2x24x32xbf16, #tpu.memory_space<vmem>>, vector<2x16x32xbf16>
    %53 = vector.shape_cast %52 : vector<2x16x32xbf16> to vector<32x32xbf16>
    %c7_58 = arith.constant 7 : index
    %c0_59 = arith.constant 0 : index
    %c0_60 = arith.constant 0 : index
    %54 = vector.load %arg2[%c7_58, %c0_59, %c0_60] : memref<9x32x64xbf16, #tpu.memory_space<vmem>>, vector<1x32x64xbf16>
    %55 = vector.shape_cast %54 : vector<1x32x64xbf16> to vector<32x64xbf16>
    %cst_61 = arith.constant dense<0.000000e+00> : vector<32x64xf32>
    %56 = tpu.matmul %53, %55, %cst_61 {dimension_numbers = #tpu.dot_dimension_numbers<[1], [0], [0], [1], [0, 0, 1, 1], [], []>} : vector<32x32xbf16>, vector<32x64xbf16>, vector<32x64xf32> -> vector<32x64xf32>
    %57 = arith.addf %51, %56 : vector<32x64xf32>
    %c0_62 = arith.constant 0 : index
    %c8 = arith.constant 8 : index
    %c0_63 = arith.constant 0 : index
    %58 = vector.load %arg7[%c0_62, %c8, %c0_63] : memref<2x24x32xbf16, #tpu.memory_space<vmem>>, vector<2x16x32xbf16>
    %59 = vector.shape_cast %58 : vector<2x16x32xbf16> to vector<32x32xbf16>
    %c8_64 = arith.constant 8 : index
    %c0_65 = arith.constant 0 : index
    %c0_66 = arith.constant 0 : index
    %60 = vector.load %arg2[%c8_64, %c0_65, %c0_66] : memref<9x32x64xbf16, #tpu.memory_space<vmem>>, vector<1x32x64xbf16>
    %61 = vector.shape_cast %60 : vector<1x32x64xbf16> to vector<32x64xbf16>
    %cst_67 = arith.constant dense<0.000000e+00> : vector<32x64xf32>
    %62 = tpu.matmul %59, %61, %cst_67 {dimension_numbers = #tpu.dot_dimension_numbers<[1], [0], [0], [1], [0, 0, 1, 1], [], []>} : vector<32x32xbf16>, vector<32x64xbf16>, vector<32x64xf32> -> vector<32x64xf32>
    %63 = arith.addf %57, %62 : vector<32x64xf32>
    %64 = vector.shape_cast %63 : vector<32x64xf32> to vector<2x16x64xf32>
    %65 = vector.extract_strided_slice %64 {offsets = [0, 0, 0], sizes = [2, 16, 32], strides = [1, 1, 1]} : vector<2x16x64xf32> to vector<2x16x32xf32>
    %66 = vector.extract_strided_slice %64 {offsets = [0, 0, 32], sizes = [2, 16, 32], strides = [1, 1, 1]} : vector<2x16x64xf32> to vector<2x16x32xf32>
    %67 = vector.extract_strided_slice %0 {offsets = [0, 0, 0], sizes = [2, 16, 1], strides = [1, 1, 1]} : vector<2x16x32xf32> to vector<2x16x1xf32>
    %cst_68 = arith.constant 0.000000e+00 : f32
    %68 = vector.broadcast %cst_68 : f32 to vector<2x16x1xf32>
    %69 = arith.cmpf one, %67, %68 : vector<2x16x1xf32>
    %cst_69 = arith.constant -1.000000e+09 : f32
    %70 = vector.shape_cast %69 : vector<2x16x1xi1> to vector<2x16x1xi1>
    %71 = vector.broadcast %70 : vector<2x16x1xi1> to vector<2x16x32xi1>
    %72 = vector.broadcast %cst_69 : f32 to vector<2x16x32xf32>
    %73 = arith.select %71, %66, %72 : vector<2x16x32xi1>, vector<2x16x32xf32>
    %cst_70 = arith.constant dense<0xFF800000> : vector<2x32xf32>
    %74 = vector.multi_reduction <maximumf>, %73, %cst_70 [1] : vector<2x16x32xf32> to vector<2x32xf32>
    %75 = vector.shape_cast %74 : vector<2x32xf32> to vector<2x1x32xf32>
    %76 = vector.broadcast %75 : vector<2x1x32xf32> to vector<2x16x32xf32>
    %77 = arith.subf %73, %76 : vector<2x16x32xf32>
    %78 = math.exp %77 : vector<2x16x32xf32>
    %cst_71 = arith.constant dense<0.000000e+00> : vector<2x32xf32>
    %79 = vector.multi_reduction <add>, %78, %cst_71 [1] : vector<2x16x32xf32> to vector<2x32xf32>
    %80 = vector.shape_cast %79 : vector<2x32xf32> to vector<2x1x32xf32>
    %81 = tpu.reciprocal %80 {approx = true} : vector<2x1x32xf32> -> vector<2x1x32xf32>
    %82 = vector.shape_cast %81 : vector<2x1x32xf32> to vector<2x32xf32>
    %83 = arith.mulf %65, %78 : vector<2x16x32xf32>
    %cst_72 = arith.constant dense<0.000000e+00> : vector<2x32xf32>
    %84 = vector.multi_reduction <add>, %83, %cst_72 [1] : vector<2x16x32xf32> to vector<2x32xf32>
    %85 = arith.mulf %84, %82 : vector<2x32xf32>
    %cst_73 = arith.constant dense<0xFF800000> : vector<2x32xf32>
    %86 = vector.multi_reduction <maximumf>, %65, %cst_73 [1] : vector<2x16x32xf32> to vector<2x32xf32>
    %87 = arith.truncf %85 : vector<2x32xf32> to vector<2x32xbf16>
    %c0_74 = arith.constant 0 : index
    %c0_75 = arith.constant 0 : index
    %88 = vector.load %arg4[%c0_74, %c0_75] : memref<64x64xbf16, #tpu.memory_space<vmem>>, vector<32x64xbf16>
    %cst_76 = arith.constant dense<0.000000e+00> : vector<2x64xf32>
    %89 = tpu.matmul %87, %88, %cst_76 {dimension_numbers = #tpu.dot_dimension_numbers<[1], [0], [0], [1], [0, 0, 1, 1], [], []>} : vector<2x32xbf16>, vector<32x64xbf16>, vector<2x64xf32> -> vector<2x64xf32>
    %90 = arith.truncf %86 : vector<2x32xf32> to vector<2x32xbf16>
    %c32 = arith.constant 32 : index
    %c0_77 = arith.constant 0 : index
    %91 = vector.load %arg4[%c32, %c0_77] : memref<64x64xbf16, #tpu.memory_space<vmem>>, vector<32x64xbf16>
    %cst_78 = arith.constant dense<0.000000e+00> : vector<2x64xf32>
    %92 = tpu.matmul %90, %91, %cst_78 {dimension_numbers = #tpu.dot_dimension_numbers<[1], [0], [0], [1], [0, 0, 1, 1], [], []>} : vector<2x32xbf16>, vector<32x64xbf16>, vector<2x64xf32> -> vector<2x64xf32>
    %93 = arith.addf %89, %92 : vector<2x64xf32>
    %c0_79 = arith.constant 0 : index
    %c0_80 = arith.constant 0 : index
    %94 = vector.load %arg5[%c0_79, %c0_80] : memref<1x64xf32, #tpu.memory_space<vmem>>, vector<1x64xf32>
    %95 = vector.broadcast %94 : vector<1x64xf32> to vector<2x64xf32>
    %96 = arith.addf %93, %95 : vector<2x64xf32>
    %97 = vector.extract_strided_slice %96 {offsets = [0, 0], sizes = [2, 32], strides = [1, 1]} : vector<2x64xf32> to vector<2x32xf32>
    %98 = vector.extract_strided_slice %96 {offsets = [0, 32], sizes = [2, 32], strides = [1, 1]} : vector<2x64xf32> to vector<2x32xf32>
    %99 = arith.negf %98 : vector<2x32xf32>
    %100 = math.exp %99 : vector<2x32xf32>
    %cst_81 = arith.constant 1.000000e+00 : f32
    %101 = vector.broadcast %cst_81 : f32 to vector<2x32xf32>
    %102 = arith.addf %101, %100 : vector<2x32xf32>
    %103 = arith.divf %101, %102 : vector<2x32xf32>
    %104 = arith.mulf %97, %103 : vector<2x32xf32>
    %c0_82 = arith.constant 0 : index
    %c0_83 = arith.constant 0 : index
    %105 = vector.load %arg6[%c0_82, %c0_83] : memref<2x32xf32, #tpu.memory_space<vmem>>, vector<2x32xf32>
    tpu.vector_store %arg6[%c0_82, %c0_83], %104 {strides = array<i32>} : memref<2x32xf32, #tpu.memory_space<vmem>>, vector<2x32xf32>,
    return
  }
  func.func @transform_0(%arg0: i32) -> (i32, i32, i32) {
    %c0_i32 = arith.constant 0 : i32
    %c0_i32_0 = arith.constant 0 : i32
    %c0_i32_1 = arith.constant 0 : i32
    return %arg0, %c0_i32, %c0_i32_0 : i32, i32, i32
  }
  func.func @transform_1(%arg0: i32) -> (i32, i32, i32) {
    %c0_i32 = arith.constant 0 : i32
    %c0_i32_0 = arith.constant 0 : i32
    %c0_i32_1 = arith.constant 0 : i32
    %c0_i32_2 = arith.constant 0 : i32
    return %c0_i32, %c0_i32_0, %c0_i32_1 : i32, i32, i32
  }
  func.func @transform_2(%arg0: i32) -> (i32, i32) {
    %c0_i32 = arith.constant 0 : i32
    %c0_i32_0 = arith.constant 0 : i32
    %c0_i32_1 = arith.constant 0 : i32
    return %c0_i32, %c0_i32_0 : i32, i32
  }
  func.func @transform_3(%arg0: i32) -> (i32, i32) {
    %c0_i32 = arith.constant 0 : i32
    %c0_i32_0 = arith.constant 0 : i32
    %c0_i32_1 = arith.constant 0 : i32
    return %c0_i32, %c0_i32_0 : i32, i32
  }
  func.func @transform_4(%arg0: i32) -> (i32, i32) {
    %c0_i32 = arith.constant 0 : i32
    %c0_i32_0 = arith.constant 0 : i32
    %c0_i32_1 = arith.constant 0 : i32
    return %c0_i32, %c0_i32_0 : i32, i32
  }
  func.func @transform_5(%arg0: i32) -> (i32, i32) {
    %c0_i32 = arith.constant 0 : i32
    %c0_i32_0 = arith.constant 0 : i32
    return %arg0, %c0_i32 : i32, i32
  }
}

</mosaic_0001>

<llo_original>
// kernel: tpu_custom_call.1
$region0: #{tpu_custom_call.1}
  #allocation0 [shape = 'u32[]', space=smem, size = 0x4, offset = 0x4, fixed_abs, tag = 'smem constant byte address 0x4 - core index']
  #allocation1 [shape = 'u32[144,128]{1,0:T(1,128)}', space=vmem, size = 0x12000, scoped, tag = 'internal scratch']
  #allocation2 [shape = 'bf16[2,24,32]{2,1,0:T(8,128)(2,1)}', space=vmem, size = 0x3000, scoped, tag = 'scratch operand']
  %s0 = inlined_call_operand.hbm [shape: f32[2,16,32], index: 0, kind: input, shape index: {}]
  %s1 = inlined_call_operand.hbm [shape: bf16[9,32,64], index: 1, kind: input, shape index: {}]
  %s2 = inlined_call_operand.vmem [shape: f32[1,64], index: 2, kind: input, shape index: {}]
  %s3 = inlined_call_operand.hbm [shape: bf16[64,64], index: 3, kind: input, shape index: {}]
  %s4 = inlined_call_operand.vmem [shape: f32[1,64], index: 4, kind: input, shape index: {}]
  %s5 = inlined_call_operand.hbm [shape: f32[2,32], index: 5, kind: output, shape index: {}]
  %s6 = sld [smem:[#allocation0]]
  $region42: #{tpu_custom_call.1} parent=0
    _
  %s8 = ssub.s32 1, %s6
  %s9 = scalar_select 0, %s8, %s6
  $region1: #{tpu_custom_call.1} parent=0
    #allocation3 [shape = 'u8[16384]{0}', space=vmem, size = 0x4000, scoped, tag = 'input window, operand 0, single buffered']
    #allocation4 [shape = 's32[1]{0}', space=sflag, size = 0x4, scoped, tag = 'scoped memory for tpu_custom_call.1']
    #allocation5 [shape = 's32[1]{0}', space=sflag, size = 0x4, scoped, tag = 'scoped memory for tpu_custom_call.1']
    #allocation6 [shape = 'u8[73728]{0}', space=vmem, size = 0x12000, scoped, tag = 'input window, operand 1, single buffered']
    #allocation7 [shape = 's32[1]{0}', space=sflag, size = 0x4, scoped, tag = 'scoped memory for tpu_custom_call.1']
    #allocation8 [shape = 'u8[16384]{0}', space=vmem, size = 0x4000, scoped, tag = 'input window, operand 3, single buffered']
    #allocation9 [shape = 'u8[1024]{0}', space=vmem, size = 0x400, scoped, tag = 'output window, operand 0, single buffered']
    %10 = vsyncpa [#allocation4], 0
    %11 = vsyncpa [#allocation7], 0
    %12 = vsyncpa [#allocation5], 0
    // Predicated region
    $region2: #{tpu_custom_call.1} parent=1 // pred_check
      _
    $region3: #{tpu_custom_call.1} parent=1 // pred_check_branch
      %14 = sbr.rel (0) target = $region5
    $region4: #{tpu_custom_call.1} parent=1 // pred_region
      %s16 = ssub.s32 512, 512
      %17 = vsyncadd [#allocation4], %s16
      %s18 = sshll.u32 [#allocation3], 4
      %s19 = int_to_ptr.vmem [resolvable:$true] %s18
      %24 = dma.hbm_to_vmem [thread:$0]  %s0, 512, %s19, [#allocation4], 128, 128, 8
    $region5: #{tpu_custom_call.1} parent=1 // pred_fallthru
      _
    // Predicated region
    $region6: #{tpu_custom_call.1} parent=1 // pred_check
      _
    $region7: #{tpu_custom_call.1} parent=1 // pred_check_branch
      %26 = sbr.rel (0) target = $region9
    $region8: #{tpu_custom_call.1} parent=1 // pred_region
      %s28 = ssub.s32 2304, 2304
      %29 = vsyncadd [#allocation7], %s28
      %s30 = sshll.u32 [#allocation6], 4
      %s31 = int_to_ptr.vmem [resolvable:$true] %s30
      %36 = dma.hbm_to_vmem [thread:$0]  %s1, 2304, %s31, [#allocation7], 64, 64, 4
    $region9: #{tpu_custom_call.1} parent=1 // pred_fallthru
      _
    // Predicated region
    $region10: #{tpu_custom_call.1} parent=1 // pred_check
      _
    $region11: #{tpu_custom_call.1} parent=1 // pred_check_branch
      %38 = sbr.rel (0) target = $region13
    $region12: #{tpu_custom_call.1} parent=1 // pred_region
      _
    $region13: #{tpu_custom_call.1} parent=1 // pred_fallthru
      _
    // Predicated region
    $region14: #{tpu_custom_call.1} parent=1 // pred_check
      _
    $region15: #{tpu_custom_call.1} parent=1 // pred_check_branch
      %40 = sbr.rel (0) target = $region17
    $region16: #{tpu_custom_call.1} parent=1 // pred_region
      %s42 = ssub.s32 512, 512
      %43 = vsyncadd [#allocation7], %s42
      %s44 = sshll.u32 [#allocation8], 4
      %s45 = int_to_ptr.vmem [resolvable:$true] %s44
      %50 = dma.hbm_to_vmem [thread:$0]  %s3, 512, %s45, [#allocation7], 64, 64, 4
    $region17: #{tpu_custom_call.1} parent=1 // pred_fallthru
      _
    // Predicated region
    $region18: #{tpu_custom_call.1} parent=1 // pred_check
      _
    $region19: #{tpu_custom_call.1} parent=1 // pred_check_branch
      %52 = sbr.rel (0) target = $region21
    $region20: #{tpu_custom_call.1} parent=1 // pred_region
      _
    $region21: #{tpu_custom_call.1} parent=1 // pred_fallthru
      _
    // Predicated region
    $region22: #{tpu_custom_call.1} parent=1 // pred_check
      _
    $region23: #{tpu_custom_call.1} parent=1 // pred_check_branch
      %54 = sbr.rel (0) target = $region25
    $region24: #{tpu_custom_call.1} parent=1 // pred_region
      %55 = dma.done [#allocation4], 512
    $region25: #{tpu_custom_call.1} parent=1 // pred_fallthru
      _
    // Predicated region
    $region26: #{tpu_custom_call.1} parent=1 // pred_check
      _
    $region27: #{tpu_custom_call.1} parent=1 // pred_check_branch
      %57 = sbr.rel (0) target = $region29
    $region28: #{tpu_custom_call.1} parent=1 // pred_region
      %58 = dma.done [#allocation7], 2304
    $region29: #{tpu_custom_call.1} parent=1 // pred_fallthru
      _
    // Predicated region
    $region30: #{tpu_custom_call.1} parent=1 // pred_check
      _
    $region31: #{tpu_custom_call.1} parent=1 // pred_check_branch
      %60 = sbr.rel (0) target = $region33
    $region32: #{tpu_custom_call.1} parent=1 // pred_region
      %61 = dma.done [#allocation7], 512
    $region33: #{tpu_custom_call.1} parent=1 // pred_fallthru
      _
    %v63 = vld [vmem:[#allocation3] sm:$0xff]
    %v64 = vld [vmem:[#allocation3 + $0x8] sm:$0xff]
    %v65 = vld [vmem:[#allocation3 + $0x10] sm:$0xff]
    %v66 = vld [vmem:[#allocation3 + $0x18] sm:$0xff]
    %vm67 = vcmask 254976
    %68 = vst.msk [vmem:[#allocation2] sm:$0x3] %vm67, 0
    %69 = vst.msk [vmem:[#allocation2 + $0xc] sm:$0x3] %vm67, 0
    %vm70 = vcmask 257026
    %71 = vst.msk [vmem:[#allocation2 + $0x8] sm:$0xc] %vm70, 0
    %72 = vst.msk [vmem:[#allocation2 + $0x14] sm:$0xc] %vm70, 0
    %v73 = vpack.c.bf16 %v64, %v63
    %v74 = vpack.c.bf16 %v66, %v65
    %v77 = vunpack.c.l.b16 %v73
    %v78 = vunpack.c.h.b16 %v73
    %v79 = vunpack.c.l.b16 %v74
    %v80 = vunpack.c.h.b16 %v74
    %v81 = vpack.c.b16 %v77, %v77
    %v82 = vpack.c.b16 %v78, %v78
    %v83 = vpack.c.b16 %v79, %v79
    %v84 = vpack.c.b16 %v80, %v80
    %vm85 = vcmask 1041408
    %vm86 = vcmask 1045508
    %vm87 = vmor %vm85, %vm86
    %v88 = vrot.slane %v81, 6
    %v89 = vrot.slane %v88, 4
    %v90 = vrot.slane %v82, 6
    %v91 = vsel %vm87, %v89, %v90
    %v92 = vrot.slane %v90, 4
    %v93 = vrot.slane %v83, 6
    %v94 = vrot.slane %v93, 4
    %v95 = vrot.slane %v84, 6
    %v96 = vsel %vm87, %v94, %v95
    %v97 = vrot.slane %v95, 4
    %104 = vst.msk [vmem:[#allocation2] sm:$0xc] %vm70, %v88
    %vm105 = vcmask 257024
    %106 = vst.msk [vmem:[#allocation2 + $0x4] sm:$0xf] %vm105, %v91
    %107 = vst.msk [vmem:[#allocation2 + $0x8] sm:$0x3] %vm67, %v92
    %108 = vst.msk [vmem:[#allocation2 + $0xc] sm:$0xc] %vm70, %v93
    %109 = vst.msk [vmem:[#allocation2 + $0x10] sm:$0xf] %vm105, %v96
    %110 = vst.msk [vmem:[#allocation2 + $0x14] sm:$0x3] %vm67, %v97
    %v111 = vld [vmem:[%s2] sm:$0x1]
    %v113 = vlaneseq
    %v114 = vshrl.u32 %v113, 7
    %v115 = vsub.s32 0, %v114
    %v116 = vrot.slane %v111, %v115
    %v118 = vld [vmem:[#allocation2] sm:$0xf]
    %v119 = vld [vmem:[#allocation2 + $0x4] sm:$0xf]
    %v120 = vld [vmem:[#allocation2 + $0xc] sm:$0xf]
    %v121 = vld [vmem:[#allocation2 + $0x10] sm:$0xf]
    %v122 = vld [vmem:[#allocation6] sm:$0xf]
    %v123 = vld [vmem:[#allocation6 + $0x4] sm:$0xf]
    %v124 = vld [vmem:[#allocation6 + $0x8] sm:$0xf]
    %v125 = vld [vmem:[#allocation6 + $0xc] sm:$0xf]
    %v130 = vunpack.c.l.b16 %v118
    %v131 = vunpack.c.l.b16 %v119
    %v132 = vunpack.c.l.b16 %v120
    %v133 = vunpack.c.l.b16 %v121
    %v134 = vpack.c.b16 %v131, %v130
    %v135 = vpack.c.b16 %v133, %v132
    %v140 = vunpack.c.l.b16 %v122
    %v141 = vunpack.c.l.b16 %v123
    %v142 = vunpack.c.l.b16 %v124
    %v143 = vunpack.c.l.b16 %v125
    %v144 = vpack.c.b16 %v141, %v140
    %v145 = vpack.c.b16 %v143, %v142
    %vm148 = vcmask 261120
    %v150 = vsel %vm148, %v134, 0
    %v153 = vsel %vm148, %v135, 0
    %155 = vmatprep.subr.bf16.mxu0 0
    %156 = vmatpush1.bf16.msra.mxu0 %v144
    %157 = vmatprep.subr.bf16.mxu0 0
    %158 = vmatpush1.bf16.msra.mxu0 %v145
    %159 = vmatprep.subr.bf16.mxu0 0
    %160 = vmatpush1.bf16.msra.mxu0 0
    %161 = vmatprep.subr.bf16.mxu0 0
    %162 = vmatpush1.bf16.msra.mxu0 0
    %163 = vmatprep.subr.bf16.mxu0 0
    %164 = vmatpush1.bf16.msra.mxu0 0
    %165 = vmatprep.subr.bf16.mxu0 0
    %166 = vmatpush1.bf16.msra.mxu0 0
    %167 = vmatprep.subr.bf16.mxu0 0
    %168 = vmatpush1.bf16.msra.mxu0 0
    %169 = vmatprep.subr.bf16.mxu0 0
    %170 = vmatpush1.bf16.msra.mxu0 0
    %171 = vmatprep.subr.bf16.mxu0 0
    %172 = vmatpush1.bf16.msra.mxu0 0
    %173 = vmatprep.subr.bf16.mxu0 0
    %174 = vmatpush1.bf16.msra.mxu0 0
    %175 = vmatprep.subr.bf16.mxu0 0
    %176 = vmatpush1.bf16.msra.mxu0 0
    %177 = vmatprep.subr.bf16.mxu0 0
    %178 = vmatpush1.bf16.msra.mxu0 0
    %179 = vmatprep.subr.bf16.mxu0 0
    %180 = vmatpush1.bf16.msra.mxu0 0
    %181 = vmatprep.subr.bf16.mxu0 0
    %182 = vmatpush1.bf16.msra.mxu0 0
    %183 = vmatprep.subr.bf16.mxu0 0
    %184 = vmatpush1.bf16.msra.mxu0 0
    %185 = vmatprep.subr.bf16.mxu0 0
    %186 = vmatpush1.bf16.msra.mxu0 0
    %187 = vmatprep.mubr.bf16.mxu0 0
    %188 = vmatmul.mubr.bf16.gmra.mrb[0].mxu0 %v150
    %v189 = vpop.f32.mrb[0].mxu0
    %v190 = vadd.f32 0.0, %v189
    %v191 = vpop.f32.mrb[0].mxu0
    %v192 = vpop.f32.mrb[0].mxu0
    %v193 = vadd.f32 0.0, %v192
    %v194 = vpop.f32.mrb[0].mxu0
    %195 = vmatprep.mubr.bf16.mxu0 0
    %196 = vmatmul.mubr.bf16.gmra.mrb[0].mxu0 %v153
    %v197 = vpop.f32.mrb[0].mxu0
    %v198 = vadd.f32 0.0, %v197
    %v199 = vpop.f32.mrb[0].mxu0
    %v200 = vpop.f32.mrb[0].mxu0
    %v201 = vadd.f32 0.0, %v200
    %v202 = vpop.f32.mrb[0].mxu0
    %203 = vdwg.mxu0
    %v204 = vadd.f32 %v116, %v190
    %v205 = vadd.f32 %v116, %v193
    %v206 = vadd.f32 %v116, %v198
    %v207 = vadd.f32 %v116, %v201
    %v208 = vld [vmem:[#allocation2] sm:$0xf]
    %v209 = vld [vmem:[#allocation2 + $0x4] sm:$0xf]
    %v210 = vld [vmem:[#allocation2 + $0x8] sm:$0x1]
    %v211 = vld [vmem:[#allocation2 + $0xc] sm:$0xf]
    %v212 = vld [vmem:[#allocation2 + $0x10] sm:$0xf]
    %v213 = vld [vmem:[#allocation2 + $0x14] sm:$0x1]
    %vm214 = vsmask.f32 3328
    %vm215 = vsmask.f32 7440
    %vm216 = vmor %vm214, %vm215
    %v218 = vshrl.u32 %v208, 16
    %v220 = vrot.slane %v218, 4
    %v221 = vshll.u32 %v208, 16
    %v223 = vrot.slane %v221, 5
    %v224 = vor.u32 %v220, %v223
    %v225 = vrot.slane %v224, 4
    %v227 = vshll.u32 %v209, 16
    %v229 = vrot.slane %v227, 5
    %v230 = vsel %vm216, %v225, %v229
    %v231 = vshrl.u32 %v209, 16
    %v233 = vrot.slane %v231, 4
    %v234 = vor.u32 %v233, %v229
    %v235 = vrot.slane %v234, 4
    %v237 = vshll.u32 %v210, 16
    %v239 = vrot.slane %v237, 5
    %v240 = vsel %vm216, %v235, %v239
    %v242 = vshrl.u32 %v211, 16
    %v244 = vrot.slane %v242, 4
    %v245 = vshll.u32 %v211, 16
    %v247 = vrot.slane %v245, 5
    %v248 = vor.u32 %v244, %v247
    %v249 = vrot.slane %v248, 4
    %v251 = vshll.u32 %v212, 16
    %v253 = vrot.slane %v251, 5
    %v254 = vsel %vm216, %v249, %v253
    %v255 = vshrl.u32 %v212, 16
    %v257 = vrot.slane %v255, 4
    %v258 = vor.u32 %v257, %v253
    %v259 = vrot.slane %v258, 4
    %v261 = vshll.u32 %v213, 16
    %v263 = vrot.slane %v261, 5
    %v264 = vsel %vm216, %v259, %v263
    %s265 = scalar_lea.vmem [#allocation6], 16
    %v266 = vld [vmem:[%s265] sm:$0xf]
    %v267 = vld [vmem:[%s265 + $0x4] sm:$0xf]
    %v268 = vld [vmem:[%s265 + $0x8] sm:$0xf]
    %v269 = vld [vmem:[%s265 + $0xc] sm:$0xf]
    %v270 = vunpack.c.l.b16 %v230
    %v271 = vunpack.c.l.b16 %v240
    %v272 = vunpack.c.l.b16 %v254
    %v273 = vunpack.c.l.b16 %v264
    %v274 = vpack.c.b16 %v271, %v270
    %v275 = vpack.c.b16 %v273, %v272
    %v280 = vunpack.c.l.b16 %v266
    %v281 = vunpack.c.l.b16 %v267
    %v282 = vunpack.c.l.b16 %v268
    %v283 = vunpack.c.l.b16 %v269
    %v284 = vpack.c.b16 %v281, %v280
    %v285 = vpack.c.b16 %v283, %v282
    %v289 = vsel %vm148, %v274, 0
    %v292 = vsel %vm148, %v275, 0
    %294 = vmatprep.subr.bf16.mxu0 0
    %295 = vmatpush1.bf16.msra.mxu0 %v284
    %296 = vmatprep.subr.bf16.mxu0 0
    %297 = vmatpush1.bf16.msra.mxu0 %v285
    %298 = vmatprep.subr.bf16.mxu0 0
    %299 = vmatpush1.bf16.msra.mxu0 0
    %300 = vmatprep.subr.bf16.mxu0 0
    %301 = vmatpush1.bf16.msra.mxu0 0
    %302 = vmatprep.subr.bf16.mxu0 0
    %303 = vmatpush1.bf16.msra.mxu0 0
    %304 = vmatprep.subr.bf16.mxu0 0
    %305 = vmatpush1.bf16.msra.mxu0 0
    %306 = vmatprep.subr.bf16.mxu0 0
    %307 = vmatpush1.bf16.msra.mxu0 0
    %308 = vmatprep.subr.bf16.mxu0 0
    %309 = vmatpush1.bf16.msra.mxu0 0
    %310 = vmatprep.subr.bf16.mxu0 0
    %311 = vmatpush1.bf16.msra.mxu0 0
    %312 = vmatprep.subr.bf16.mxu0 0
    %313 = vmatpush1.bf16.msra.mxu0 0
    %314 = vmatprep.subr.bf16.mxu0 0
    %315 = vmatpush1.bf16.msra.mxu0 0
    %316 = vmatprep.subr.bf16.mxu0 0
    %317 = vmatpush1.bf16.msra.mxu0 0
    %318 = vmatprep.subr.bf16.mxu0 0
    %319 = vmatpush1.bf16.msra.mxu0 0
    %320 = vmatprep.subr.bf16.mxu0 0
    %321 = vmatpush1.bf16.msra.mxu0 0
    %322 = vmatprep.subr.bf16.mxu0 0
    %323 = vmatpush1.bf16.msra.mxu0 0
    %324 = vmatprep.subr.bf16.mxu0 0
    %325 = vmatpush1.bf16.msra.mxu0 0
    %326 = vmatprep.mubr.bf16.mxu0 0
    %327 = vmatmul.mubr.bf16.gmra.mrb[0].mxu0 %v289
    %v328 = vpop.f32.mrb[0].mxu0
    %v329 = vadd.f32 0.0, %v328
    %v330 = vpop.f32.mrb[0].mxu0
    %v331 = vpop.f32.mrb[0].mxu0
    %v332 = vadd.f32 0.0, %v331
    %v333 = vpop.f32.mrb[0].mxu0
    %334 = vmatprep.mubr.bf16.mxu0 0
    %335 = vmatmul.mubr.bf16.gmra.mrb[0].mxu0 %v292
    %v336 = vpop.f32.mrb[0].mxu0
    %v337 = vadd.f32 0.0, %v336
    %v338 = vpop.f32.mrb[0].mxu0
    %v339 = vpop.f32.mrb[0].mxu0
    %v340 = vadd.f32 0.0, %v339
    %v341 = vpop.f32.mrb[0].mxu0
    %342 = vdwg.mxu0
    %v343 = vadd.f32 %v204, %v329
    %v344 = vadd.f32 %v205, %v332
    %v345 = vadd.f32 %v206, %v337
    %v346 = vadd.f32 %v207, %v340
    %v347 = vld [vmem:[#allocation2] sm:$0xe]
    %v348 = vld [vmem:[#allocation2 + $0xc] sm:$0xe]
    %vm355 = vcmask 1042432
    %vm356 = vcmask 1046532
    %vm357 = vmor %vm355, %vm356
    %v358 = vrot.slane %v347, 5
    %v359 = vrot.slane %v358, 4
    %v360 = vrot.slane %v209, 5
    %v361 = vsel %vm357, %v359, %v360
    %v362 = vrot.slane %v360, 4
    %v363 = vrot.slane %v210, 5
    %v364 = vsel %vm357, %v362, %v363
    %v365 = vrot.slane %v348, 5
    %v366 = vrot.slane %v365, 4
    %v367 = vrot.slane %v212, 5
    %v368 = vsel %vm357, %v366, %v367
    %v369 = vrot.slane %v367, 4
    %v370 = vrot.slane %v213, 5
    %v371 = vsel %vm357, %v369, %v370
    %s372 = scalar_lea.vmem [#allocation6], 32
    %v373 = vld [vmem:[%s372] sm:$0xf]
    %v374 = vld [vmem:[%s372 + $0x4] sm:$0xf]
    %v375 = vld [vmem:[%s372 + $0x8] sm:$0xf]
    %v376 = vld [vmem:[%s372 + $0xc] sm:$0xf]
    %v377 = vunpack.c.l.b16 %v361
    %v378 = vunpack.c.l.b16 %v364
    %v379 = vunpack.c.l.b16 %v368
    %v380 = vunpack.c.l.b16 %v371
    %v381 = vpack.c.b16 %v378, %v377
    %v382 = vpack.c.b16 %v380, %v379
    %v387 = vunpack.c.l.b16 %v373
    %v388 = vunpack.c.l.b16 %v374
    %v389 = vunpack.c.l.b16 %v375
    %v390 = vunpack.c.l.b16 %v376
    %v391 = vpack.c.b16 %v388, %v387
    %v392 = vpack.c.b16 %v390, %v389
    %v396 = vsel %vm148, %v381, 0
    %v399 = vsel %vm148, %v382, 0
    %401 = vmatprep.subr.bf16.mxu0 0
    %402 = vmatpush1.bf16.msra.mxu0 %v391
    %403 = vmatprep.subr.bf16.mxu0 0
    %404 = vmatpush1.bf16.msra.mxu0 %v392
    %405 = vmatprep.subr.bf16.mxu0 0
    %406 = vmatpush1.bf16.msra.mxu0 0
    %407 = vmatprep.subr.bf16.mxu0 0
    %408 = vmatpush1.bf16.msra.mxu0 0
    %409 = vmatprep.subr.bf16.mxu0 0
    %410 = vmatpush1.bf16.msra.mxu0 0
    %411 = vmatprep.subr.bf16.mxu0 0
    %412 = vmatpush1.bf16.msra.mxu0 0
    %413 = vmatprep.subr.bf16.mxu0 0
    %414 = vmatpush1.bf16.msra.mxu0 0
    %415 = vmatprep.subr.bf16.mxu0 0
    %416 = vmatpush1.bf16.msra.mxu0 0
    %417 = vmatprep.subr.bf16.mxu0 0
    %418 = vmatpush1.bf16.msra.mxu0 0
    %419 = vmatprep.subr.bf16.mxu0 0
    %420 = vmatpush1.bf16.msra.mxu0 0
    %421 = vmatprep.subr.bf16.mxu0 0
    %422 = vmatpush1.bf16.msra.mxu0 0
    %423 = vmatprep.subr.bf16.mxu0 0
    %424 = vmatpush1.bf16.msra.mxu0 0
    %425 = vmatprep.subr.bf16.mxu0 0
    %426 = vmatpush1.bf16.msra.mxu0 0
    %427 = vmatprep.subr.bf16.mxu0 0
    %428 = vmatpush1.bf16.msra.mxu0 0
    %429 = vmatprep.subr.bf16.mxu0 0
    %430 = vmatpush1.bf16.msra.mxu0 0
    %431 = vmatprep.subr.bf16.mxu0 0
    %432 = vmatpush1.bf16.msra.mxu0 0
    %433 = vmatprep.mubr.bf16.mxu0 0
    %434 = vmatmul.mubr.bf16.gmra.mrb[0].mxu0 %v396
    %v435 = vpop.f32.mrb[0].mxu0
    %v436 = vadd.f32 0.0, %v435
    %v437 = vpop.f32.mrb[0].mxu0
    %v438 = vpop.f32.mrb[0].mxu0
    %v439 = vadd.f32 0.0, %v438
    %v440 = vpop.f32.mrb[0].mxu0
    %441 = vmatprep.mubr.bf16.mxu0 0
    %442 = vmatmul.mubr.bf16.gmra.mrb[0].mxu0 %v399
    %v443 = vpop.f32.mrb[0].mxu0
    %v444 = vadd.f32 0.0, %v443
    %v445 = vpop.f32.mrb[0].mxu0
    %v446 = vpop.f32.mrb[0].mxu0
    %v447 = vadd.f32 0.0, %v446
    %v448 = vpop.f32.mrb[0].mxu0
    %449 = vdwg.mxu0
    %v450 = vadd.f32 %v343, %v436
    %v451 = vadd.f32 %v344, %v439
    %v452 = vadd.f32 %v345, %v444
    %v453 = vadd.f32 %v346, %v447
    %v454 = vld [vmem:[#allocation2 + $0x8] sm:$0x3]
    %v455 = vld [vmem:[#allocation2 + $0x14] sm:$0x3]
    %vm456 = vsmask.f32 2304
    %vm457 = vsmask.f32 6416
    %vm458 = vmor %vm456, %vm457
    %v460 = vshrl.u32 %v347, 16
    %v462 = vrot.slane %v460, 5
    %v463 = vshll.u32 %v347, 16
    %v465 = vrot.slane %v463, 6
    %v466 = vor.u32 %v462, %v465
    %v467 = vrot.slane %v466, 4
    %v468 = vrot.slane %v231, 5
    %v469 = vrot.slane %v227, 6
    %v470 = vor.u32 %v468, %v469
    %v471 = vsel %vm458, %v467, %v470
    %v472 = vrot.slane %v470, 4
    %v474 = vshrl.u32 %v454, 16
    %v476 = vrot.slane %v474, 5
    %v477 = vshll.u32 %v454, 16
    %v479 = vrot.slane %v477, 6
    %v480 = vor.u32 %v476, %v479
    %v481 = vsel %vm458, %v472, %v480
    %v483 = vshrl.u32 %v348, 16
    %v485 = vrot.slane %v483, 5
    %v486 = vshll.u32 %v348, 16
    %v488 = vrot.slane %v486, 6
    %v489 = vor.u32 %v485, %v488
    %v490 = vrot.slane %v489, 4
    %v491 = vrot.slane %v255, 5
    %v492 = vrot.slane %v251, 6
    %v493 = vor.u32 %v491, %v492
    %v494 = vsel %vm458, %v490, %v493
    %v495 = vrot.slane %v493, 4
    %v497 = vshrl.u32 %v455, 16
    %v499 = vrot.slane %v497, 5
    %v500 = vshll.u32 %v455, 16
    %v502 = vrot.slane %v500, 6
    %v503 = vor.u32 %v499, %v502
    %v504 = vsel %vm458, %v495, %v503
    %s505 = scalar_lea.vmem [#allocation6], 48
    %v506 = vld [vmem:[%s505] sm:$0xf]
    %v507 = vld [vmem:[%s505 + $0x4] sm:$0xf]
    %v508 = vld [vmem:[%s505 + $0x8] sm:$0xf]
    %v509 = vld [vmem:[%s505 + $0xc] sm:$0xf]
    %v510 = vunpack.c.l.b16 %v471
    %v511 = vunpack.c.l.b16 %v481
    %v512 = vunpack.c.l.b16 %v494
    %v513 = vunpack.c.l.b16 %v504
    %v514 = vpack.c.b16 %v511, %v510
    %v515 = vpack.c.b16 %v513, %v512
    %v520 = vunpack.c.l.b16 %v506
    %v521 = vunpack.c.l.b16 %v507
    %v522 = vunpack.c.l.b16 %v508
    %v523 = vunpack.c.l.b16 %v509
    %v524 = vpack.c.b16 %v521, %v520
    %v525 = vpack.c.b16 %v523, %v522
    %v529 = vsel %vm148, %v514, 0
    %v532 = vsel %vm148, %v515, 0
    %534 = vmatprep.subr.bf16.mxu0 0
    %535 = vmatpush1.bf16.msra.mxu0 %v524
    %536 = vmatprep.subr.bf16.mxu0 0
    %537 = vmatpush1.bf16.msra.mxu0 %v525
    %538 = vmatprep.subr.bf16.mxu0 0
    %539 = vmatpush1.bf16.msra.mxu0 0
    %540 = vmatprep.subr.bf16.mxu0 0
    %541 = vmatpush1.bf16.msra.mxu0 0
    %542 = vmatprep.subr.bf16.mxu0 0
    %543 = vmatpush1.bf16.msra.mxu0 0
    %544 = vmatprep.subr.bf16.mxu0 0
    %545 = vmatpush1.bf16.msra.mxu0 0
    %546 = vmatprep.subr.bf16.mxu0 0
    %547 = vmatpush1.bf16.msra.mxu0 0
    %548 = vmatprep.subr.bf16.mxu0 0
    %549 = vmatpush1.bf16.msra.mxu0 0
    %550 = vmatprep.subr.bf16.mxu0 0
    %551 = vmatpush1.bf16.msra.mxu0 0
    %552 = vmatprep.subr.bf16.mxu0 0
    %553 = vmatpush1.bf16.msra.mxu0 0
    %554 = vmatprep.subr.bf16.mxu0 0
    %555 = vmatpush1.bf16.msra.mxu0 0
    %556 = vmatprep.subr.bf16.mxu0 0
    %557 = vmatpush1.bf16.msra.mxu0 0
    %558 = vmatprep.subr.bf16.mxu0 0
    %559 = vmatpush1.bf16.msra.mxu0 0
    %560 = vmatprep.subr.bf16.mxu0 0
    %561 = vmatpush1.bf16.msra.mxu0 0
    %562 = vmatprep.subr.bf16.mxu0 0
    %563 = vmatpush1.bf16.msra.mxu0 0
    %564 = vmatprep.subr.bf16.mxu0 0
    %565 = vmatpush1.bf16.msra.mxu0 0
    %566 = vmatprep.mubr.bf16.mxu0 0
    %567 = vmatmul.mubr.bf16.gmra.mrb[0].mxu0 %v529
    %v568 = vpop.f32.mrb[0].mxu0
    %v569 = vadd.f32 0.0, %v568
    %v570 = vpop.f32.mrb[0].mxu0
    %v571 = vpop.f32.mrb[0].mxu0
    %v572 = vadd.f32 0.0, %v571
    %v573 = vpop.f32.mrb[0].mxu0
    %574 = vmatprep.mubr.bf16.mxu0 0
    %575 = vmatmul.mubr.bf16.gmra.mrb[0].mxu0 %v532
    %v576 = vpop.f32.mrb[0].mxu0
    %v577 = vadd.f32 0.0, %v576
    %v578 = vpop.f32.mrb[0].mxu0
    %v579 = vpop.f32.mrb[0].mxu0
    %v580 = vadd.f32 0.0, %v579
    %v581 = vpop.f32.mrb[0].mxu0
    %582 = vdwg.mxu0
    %v583 = vadd.f32 %v450, %v569
    %v584 = vadd.f32 %v451, %v572
    %v585 = vadd.f32 %v452, %v577
    %v586 = vadd.f32 %v453, %v580
    %v587 = vld [vmem:[#allocation2] sm:$0xc]
    %v588 = vld [vmem:[#allocation2 + $0xc] sm:$0xc]
    %v593 = vrot.slane %v587, 6
    %v594 = vrot.slane %v593, 4
    %v595 = vrot.slane %v209, 6
    %v596 = vsel %vm87, %v594, %v595
    %v597 = vrot.slane %v595, 4
    %v598 = vrot.slane %v454, 6
    %v599 = vsel %vm87, %v597, %v598
    %v600 = vrot.slane %v588, 6
    %v601 = vrot.slane %v600, 4
    %v602 = vrot.slane %v212, 6
    %v603 = vsel %vm87, %v601, %v602
    %v604 = vrot.slane %v602, 4
    %v605 = vrot.slane %v455, 6
    %v606 = vsel %vm87, %v604, %v605
    %s607 = scalar_lea.vmem [#allocation6], 64
    %v608 = vld [vmem:[%s607] sm:$0xf]
    %v609 = vld [vmem:[%s607 + $0x4] sm:$0xf]
    %v610 = vld [vmem:[%s607 + $0x8] sm:$0xf]
    %v611 = vld [vmem:[%s607 + $0xc] sm:$0xf]
    %v612 = vunpack.c.l.b16 %v596
    %v613 = vunpack.c.l.b16 %v599
    %v614 = vunpack.c.l.b16 %v603
    %v615 = vunpack.c.l.b16 %v606
    %v616 = vpack.c.b16 %v613, %v612
    %v617 = vpack.c.b16 %v615, %v614
    %v622 = vunpack.c.l.b16 %v608
    %v623 = vunpack.c.l.b16 %v609
    %v624 = vunpack.c.l.b16 %v610
    %v625 = vunpack.c.l.b16 %v611
    %v626 = vpack.c.b16 %v623, %v622
    %v627 = vpack.c.b16 %v625, %v624
    %v631 = vsel %vm148, %v616, 0
    %v634 = vsel %vm148, %v617, 0
    %636 = vmatprep.subr.bf16.mxu0 0
    %637 = vmatpush1.bf16.msra.mxu0 %v626
    %638 = vmatprep.subr.bf16.mxu0 0
    %639 = vmatpush1.bf16.msra.mxu0 %v627
    %640 = vmatprep.subr.bf16.mxu0 0
    %641 = vmatpush1.bf16.msra.mxu0 0
    %642 = vmatprep.subr.bf16.mxu0 0
    %643 = vmatpush1.bf16.msra.mxu0 0
    %644 = vmatprep.subr.bf16.mxu0 0
    %645 = vmatpush1.bf16.msra.mxu0 0
    %646 = vmatprep.subr.bf16.mxu0 0
    %647 = vmatpush1.bf16.msra.mxu0 0
    %648 = vmatprep.subr.bf16.mxu0 0
    %649 = vmatpush1.bf16.msra.mxu0 0
    %650 = vmatprep.subr.bf16.mxu0 0
    %651 = vmatpush1.bf16.msra.mxu0 0
    %652 = vmatprep.subr.bf16.mxu0 0
    %653 = vmatpush1.bf16.msra.mxu0 0
    %654 = vmatprep.subr.bf16.mxu0 0
    %655 = vmatpush1.bf16.msra.mxu0 0
    %656 = vmatprep.subr.bf16.mxu0 0
    %657 = vmatpush1.bf16.msra.mxu0 0
    %658 = vmatprep.subr.bf16.mxu0 0
    %659 = vmatpush1.bf16.msra.mxu0 0
    %660 = vmatprep.subr.bf16.mxu0 0
    %661 = vmatpush1.bf16.msra.mxu0 0
    %662 = vmatprep.subr.bf16.mxu0 0
    %663 = vmatpush1.bf16.msra.mxu0 0
    %664 = vmatprep.subr.bf16.mxu0 0
    %665 = vmatpush1.bf16.msra.mxu0 0
    %666 = vmatprep.subr.bf16.mxu0 0
    %667 = vmatpush1.bf16.msra.mxu0 0
    %668 = vmatprep.mubr.bf16.mxu0 0
    %669 = vmatmul.mubr.bf16.gmra.mrb[0].mxu0 %v631
    %v670 = vpop.f32.mrb[0].mxu0
    %v671 = vadd.f32 0.0, %v670
    %v672 = vpop.f32.mrb[0].mxu0
    %v673 = vpop.f32.mrb[0].mxu0
    %v674 = vadd.f32 0.0, %v673
    %v675 = vpop.f32.mrb[0].mxu0
    %676 = vmatprep.mubr.bf16.mxu0 0
    %677 = vmatmul.mubr.bf16.gmra.mrb[0].mxu0 %v634
    %v678 = vpop.f32.mrb[0].mxu0
    %v679 = vadd.f32 0.0, %v678
    %v680 = vpop.f32.mrb[0].mxu0
    %v681 = vpop.f32.mrb[0].mxu0
    %v682 = vadd.f32 0.0, %v681
    %v683 = vpop.f32.mrb[0].mxu0
    %684 = vdwg.mxu0
    %v685 = vadd.f32 %v583, %v671
    %v686 = vadd.f32 %v584, %v674
    %v687 = vadd.f32 %v585, %v679
    %v688 = vadd.f32 %v586, %v682
    %v689 = vld [vmem:[#allocation2 + $0x8] sm:$0x7]
    %v690 = vld [vmem:[#allocation2 + $0x14] sm:$0x7]
    %vm691 = vsmask.f32 1280
    %vm692 = vsmask.f32 5392
    %vm693 = vmor %vm691, %vm692
    %v695 = vshrl.u32 %v587, 16
    %v697 = vrot.slane %v695, 6
    %v698 = vshll.u32 %v587, 16
    %v700 = vrot.slane %v698, 7
    %v701 = vor.u32 %v697, %v700
    %v702 = vrot.slane %v701, 4
    %v703 = vrot.slane %v231, 6
    %v704 = vrot.slane %v227, 7
    %v705 = vor.u32 %v703, %v704
    %v706 = vsel %vm693, %v702, %v705
    %v707 = vrot.slane %v705, 4
    %v709 = vshrl.u32 %v689, 16
    %v711 = vrot.slane %v709, 6
    %v712 = vshll.u32 %v689, 16
    %v714 = vrot.slane %v712, 7
    %v715 = vor.u32 %v711, %v714
    %v716 = vsel %vm693, %v707, %v715
    %v718 = vshrl.u32 %v588, 16
    %v720 = vrot.slane %v718, 6
    %v721 = vshll.u32 %v588, 16
    %v723 = vrot.slane %v721, 7
    %v724 = vor.u32 %v720, %v723
    %v725 = vrot.slane %v724, 4
    %v726 = vrot.slane %v255, 6
    %v727 = vrot.slane %v251, 7
    %v728 = vor.u32 %v726, %v727
    %v729 = vsel %vm693, %v725, %v728
    %v730 = vrot.slane %v728, 4
    %v732 = vshrl.u32 %v690, 16
    %v734 = vrot.slane %v732, 6
    %v735 = vshll.u32 %v690, 16
    %v737 = vrot.slane %v735, 7
    %v738 = vor.u32 %v734, %v737
    %v739 = vsel %vm693, %v730, %v738
    %s740 = scalar_lea.vmem [#allocation6], 80
    %v741 = vld [vmem:[%s740] sm:$0xf]
    %v742 = vld [vmem:[%s740 + $0x4] sm:$0xf]
    %v743 = vld [vmem:[%s740 + $0x8] sm:$0xf]
    %v744 = vld [vmem:[%s740 + $0xc] sm:$0xf]
    %v745 = vunpack.c.l.b16 %v706
    %v746 = vunpack.c.l.b16 %v716
    %v747 = vunpack.c.l.b16 %v729
    %v748 = vunpack.c.l.b16 %v739
    %v749 = vpack.c.b16 %v746, %v745
    %v750 = vpack.c.b16 %v748, %v747
    %v755 = vunpack.c.l.b16 %v741
    %v756 = vunpack.c.l.b16 %v742
    %v757 = vunpack.c.l.b16 %v743
    %v758 = vunpack.c.l.b16 %v744
    %v759 = vpack.c.b16 %v756, %v755
    %v760 = vpack.c.b16 %v758, %v757
    %v764 = vsel %vm148, %v749, 0
    %v767 = vsel %vm148, %v750, 0
    %769 = vmatprep.subr.bf16.mxu0 0
    %770 = vmatpush1.bf16.msra.mxu0 %v759
    %771 = vmatprep.subr.bf16.mxu0 0
    %772 = vmatpush1.bf16.msra.mxu0 %v760
    %773 = vmatprep.subr.bf16.mxu0 0
    %774 = vmatpush1.bf16.msra.mxu0 0
    %775 = vmatprep.subr.bf16.mxu0 0
    %776 = vmatpush1.bf16.msra.mxu0 0
    %777 = vmatprep.subr.bf16.mxu0 0
    %778 = vmatpush1.bf16.msra.mxu0 0
    %779 = vmatprep.subr.bf16.mxu0 0
    %780 = vmatpush1.bf16.msra.mxu0 0
    %781 = vmatprep.subr.bf16.mxu0 0
    %782 = vmatpush1.bf16.msra.mxu0 0
    %783 = vmatprep.subr.bf16.mxu0 0
    %784 = vmatpush1.bf16.msra.mxu0 0
    %785 = vmatprep.subr.bf16.mxu0 0
    %786 = vmatpush1.bf16.msra.mxu0 0
    %787 = vmatprep.subr.bf16.mxu0 0
    %788 = vmatpush1.bf16.msra.mxu0 0
    %789 = vmatprep.subr.bf16.mxu0 0
    %790 = vmatpush1.bf16.msra.mxu0 0
    %791 = vmatprep.subr.bf16.mxu0 0
    %792 = vmatpush1.bf16.msra.mxu0 0
    %793 = vmatprep.subr.bf16.mxu0 0
    %794 = vmatpush1.bf16.msra.mxu0 0
    %795 = vmatprep.subr.bf16.mxu0 0
    %796 = vmatpush1.bf16.msra.mxu0 0
    %797 = vmatprep.subr.bf16.mxu0 0
    %798 = vmatpush1.bf16.msra.mxu0 0
    %799 = vmatprep.subr.bf16.mxu0 0
    %800 = vmatpush1.bf16.msra.mxu0 0
    %801 = vmatprep.mubr.bf16.mxu0 0
    %802 = vmatmul.mubr.bf16.gmra.mrb[0].mxu0 %v764
    %v803 = vpop.f32.mrb[0].mxu0
    %v804 = vadd.f32 0.0, %v803
    %v805 = vpop.f32.mrb[0].mxu0
    %v806 = vpop.f32.mrb[0].mxu0
    %v807 = vadd.f32 0.0, %v806
    %v808 = vpop.f32.mrb[0].mxu0
    %809 = vmatprep.mubr.bf16.mxu0 0
    %810 = vmatmul.mubr.bf16.gmra.mrb[0].mxu0 %v767
    %v811 = vpop.f32.mrb[0].mxu0
    %v812 = vadd.f32 0.0, %v811
    %v813 = vpop.f32.mrb[0].mxu0
    %v814 = vpop.f32.mrb[0].mxu0
    %v815 = vadd.f32 0.0, %v814
    %v816 = vpop.f32.mrb[0].mxu0
    %817 = vdwg.mxu0
    %v818 = vadd.f32 %v685, %v804
    %v819 = vadd.f32 %v686, %v807
    %v820 = vadd.f32 %v687, %v812
    %v821 = vadd.f32 %v688, %v815
    %v822 = vld [vmem:[#allocation2] sm:$0x8]
    %v823 = vld [vmem:[#allocation2 + $0xc] sm:$0x8]
    %vm828 = vcmask 1040384
    %vm829 = vcmask 1044484
    %vm830 = vmor %vm828, %vm829
    %v831 = vrot.slane %v822, 7
    %v832 = vrot.slane %v831, 4
    %v833 = vrot.slane %v209, 7
    %v834 = vsel %vm830, %v832, %v833
    %v835 = vrot.slane %v833, 4
    %v836 = vrot.slane %v689, 7
    %v837 = vsel %vm830, %v835, %v836
    %v838 = vrot.slane %v823, 7
    %v839 = vrot.slane %v838, 4
    %v840 = vrot.slane %v212, 7
    %v841 = vsel %vm830, %v839, %v840
    %v842 = vrot.slane %v840, 4
    %v843 = vrot.slane %v690, 7
    %v844 = vsel %vm830, %v842, %v843
    %s845 = scalar_lea.vmem [#allocation6], 96
    %v846 = vld [vmem:[%s845] sm:$0xf]
    %v847 = vld [vmem:[%s845 + $0x4] sm:$0xf]
    %v848 = vld [vmem:[%s845 + $0x8] sm:$0xf]
    %v849 = vld [vmem:[%s845 + $0xc] sm:$0xf]
    %v850 = vunpack.c.l.b16 %v834
    %v851 = vunpack.c.l.b16 %v837
    %v852 = vunpack.c.l.b16 %v841
    %v853 = vunpack.c.l.b16 %v844
    %v854 = vpack.c.b16 %v851, %v850
    %v855 = vpack.c.b16 %v853, %v852
    %v860 = vunpack.c.l.b16 %v846
    %v861 = vunpack.c.l.b16 %v847
    %v862 = vunpack.c.l.b16 %v848
    %v863 = vunpack.c.l.b16 %v849
    %v864 = vpack.c.b16 %v861, %v860
    %v865 = vpack.c.b16 %v863, %v862
    %v869 = vsel %vm148, %v854, 0
    %v872 = vsel %vm148, %v855, 0
    %874 = vmatprep.subr.bf16.mxu0 0
    %875 = vmatpush1.bf16.msra.mxu0 %v864
    %876 = vmatprep.subr.bf16.mxu0 0
    %877 = vmatpush1.bf16.msra.mxu0 %v865
    %878 = vmatprep.subr.bf16.mxu0 0
    %879 = vmatpush1.bf16.msra.mxu0 0
    %880 = vmatprep.subr.bf16.mxu0 0
    %881 = vmatpush1.bf16.msra.mxu0 0
    %882 = vmatprep.subr.bf16.mxu0 0
    %883 = vmatpush1.bf16.msra.mxu0 0
    %884 = vmatprep.subr.bf16.mxu0 0
    %885 = vmatpush1.bf16.msra.mxu0 0
    %886 = vmatprep.subr.bf16.mxu0 0
    %887 = vmatpush1.bf16.msra.mxu0 0
    %888 = vmatprep.subr.bf16.mxu0 0
    %889 = vmatpush1.bf16.msra.mxu0 0
    %890 = vmatprep.subr.bf16.mxu0 0
    %891 = vmatpush1.bf16.msra.mxu0 0
    %892 = vmatprep.subr.bf16.mxu0 0
    %893 = vmatpush1.bf16.msra.mxu0 0
    %894 = vmatprep.subr.bf16.mxu0 0
    %895 = vmatpush1.bf16.msra.mxu0 0
    %896 = vmatprep.subr.bf16.mxu0 0
    %897 = vmatpush1.bf16.msra.mxu0 0
    %898 = vmatprep.subr.bf16.mxu0 0
    %899 = vmatpush1.bf16.msra.mxu0 0
    %900 = vmatprep.subr.bf16.mxu0 0
    %901 = vmatpush1.bf16.msra.mxu0 0
    %902 = vmatprep.subr.bf16.mxu0 0
    %903 = vmatpush1.bf16.msra.mxu0 0
    %904 = vmatprep.subr.bf16.mxu0 0
    %905 = vmatpush1.bf16.msra.mxu0 0
    %906 = vmatprep.mubr.bf16.mxu0 0
    %907 = vmatmul.mubr.bf16.gmra.mrb[0].mxu0 %v869
    %v908 = vpop.f32.mrb[0].mxu0
    %v909 = vadd.f32 0.0, %v908
    %v910 = vpop.f32.mrb[0].mxu0
    %v911 = vpop.f32.mrb[0].mxu0
    %v912 = vadd.f32 0.0, %v911
    %v913 = vpop.f32.mrb[0].mxu0
    %914 = vmatprep.mubr.bf16.mxu0 0
    %915 = vmatmul.mubr.bf16.gmra.mrb[0].mxu0 %v872
    %v916 = vpop.f32.mrb[0].mxu0
    %v917 = vadd.f32 0.0, %v916
    %v918 = vpop.f32.mrb[0].mxu0
    %v919 = vpop.f32.mrb[0].mxu0
    %v920 = vadd.f32 0.0, %v919
    %v921 = vpop.f32.mrb[0].mxu0
    %922 = vdwg.mxu0
    %v923 = vadd.f32 %v818, %v909
    %v924 = vadd.f32 %v819, %v912
    %v925 = vadd.f32 %v820, %v917
    %v926 = vadd.f32 %v821, %v920
    %v927 = vld [vmem:[#allocation2 + $0x8] sm:$0xf]
    %v928 = vld [vmem:[#allocation2 + $0x14] sm:$0xf]
    %vm929 = vsmask.f32 256
    %vm930 = vsmask.f32 4368
    %vm931 = vmor %vm929, %vm930
    %v933 = vshrl.u32 %v822, 16
    %v935 = vrot.slane %v933, 7
    %v936 = vrot.slane %v935, 4
    %v937 = vrot.slane %v231, 7
    %v938 = vor.u32 %v937, %v227
    %v939 = vsel %vm931, %v936, %v938
    %v940 = vrot.slane %v937, 4
    %v942 = vshrl.u32 %v927, 16
    %v944 = vrot.slane %v942, 7
    %v945 = vshll.u32 %v927, 16
    %v947 = vor.u32 %v944, %v945
    %v948 = vsel %vm931, %v940, %v947
    %v950 = vshrl.u32 %v823, 16
    %v952 = vrot.slane %v950, 7
    %v953 = vrot.slane %v952, 4
    %v954 = vrot.slane %v255, 7
    %v955 = vor.u32 %v954, %v251
    %v956 = vsel %vm931, %v953, %v955
    %v957 = vrot.slane %v954, 4
    %v959 = vshrl.u32 %v928, 16
    %v961 = vrot.slane %v959, 7
    %v962 = vshll.u32 %v928, 16
    %v964 = vor.u32 %v961, %v962
    %v965 = vsel %vm931, %v957, %v964
    %s966 = scalar_lea.vmem [#allocation6], 112
    %v967 = vld [vmem:[%s966] sm:$0xf]
    %v968 = vld [vmem:[%s966 + $0x4] sm:$0xf]
    %v969 = vld [vmem:[%s966 + $0x8] sm:$0xf]
    %v970 = vld [vmem:[%s966 + $0xc] sm:$0xf]
    %v971 = vunpack.c.l.b16 %v939
    %v972 = vunpack.c.l.b16 %v948
    %v973 = vunpack.c.l.b16 %v956
    %v974 = vunpack.c.l.b16 %v965
    %v975 = vpack.c.b16 %v972, %v971
    %v976 = vpack.c.b16 %v974, %v973
    %v981 = vunpack.c.l.b16 %v967
    %v982 = vunpack.c.l.b16 %v968
    %v983 = vunpack.c.l.b16 %v969
    %v984 = vunpack.c.l.b16 %v970
    %v985 = vpack.c.b16 %v982, %v981
    %v986 = vpack.c.b16 %v984, %v983
    %v990 = vsel %vm148, %v975, 0
    %v993 = vsel %vm148, %v976, 0
    %995 = vmatprep.subr.bf16.mxu0 0
    %996 = vmatpush1.bf16.msra.mxu0 %v985
    %997 = vmatprep.subr.bf16.mxu0 0
    %998 = vmatpush1.bf16.msra.mxu0 %v986
    %999 = vmatprep.subr.bf16.mxu0 0
    %1000 = vmatpush1.bf16.msra.mxu0 0
    %1001 = vmatprep.subr.bf16.mxu0 0
    %1002 = vmatpush1.bf16.msra.mxu0 0
    %1003 = vmatprep.subr.bf16.mxu0 0
    %1004 = vmatpush1.bf16.msra.mxu0 0
    %1005 = vmatprep.subr.bf16.mxu0 0
    %1006 = vmatpush1.bf16.msra.mxu0 0
    %1007 = vmatprep.subr.bf16.mxu0 0
    %1008 = vmatpush1.bf16.msra.mxu0 0
    %1009 = vmatprep.subr.bf16.mxu0 0
    %1010 = vmatpush1.bf16.msra.mxu0 0
    %1011 = vmatprep.subr.bf16.mxu0 0
    %1012 = vmatpush1.bf16.msra.mxu0 0
    %1013 = vmatprep.subr.bf16.mxu0 0
    %1014 = vmatpush1.bf16.msra.mxu0 0
    %1015 = vmatprep.subr.bf16.mxu0 0
    %1016 = vmatpush1.bf16.msra.mxu0 0
    %1017 = vmatprep.subr.bf16.mxu0 0
    %1018 = vmatpush1.bf16.msra.mxu0 0
    %1019 = vmatprep.subr.bf16.mxu0 0
    %1020 = vmatpush1.bf16.msra.mxu0 0
    %1021 = vmatprep.subr.bf16.mxu0 0
    %1022 = vmatpush1.bf16.msra.mxu0 0
    %1023 = vmatprep.subr.bf16.mxu0 0
    %1024 = vmatpush1.bf16.msra.mxu0 0
    %1025 = vmatprep.subr.bf16.mxu0 0
    %1026 = vmatpush1.bf16.msra.mxu0 0
    %1027 = vmatprep.mubr.bf16.mxu0 0
    %1028 = vmatmul.mubr.bf16.gmra.mrb[0].mxu0 %v990
    %v1029 = vpop.f32.mrb[0].mxu0
    %v1030 = vadd.f32 0.0, %v1029
    %v1031 = vpop.f32.mrb[0].mxu0
    %v1032 = vpop.f32.mrb[0].mxu0
    %v1033 = vadd.f32 0.0, %v1032
    %v1034 = vpop.f32.mrb[0].mxu0
    %1035 = vmatprep.mubr.bf16.mxu0 0
    %1036 = vmatmul.mubr.bf16.gmra.mrb[0].mxu0 %v993
    %v1037 = vpop.f32.mrb[0].mxu0
    %v1038 = vadd.f32 0.0, %v1037
    %v1039 = vpop.f32.mrb[0].mxu0
    %v1040 = vpop.f32.mrb[0].mxu0
    %v1041 = vadd.f32 0.0, %v1040
    %v1042 = vpop.f32.mrb[0].mxu0
    %1043 = vdwg.mxu0
    %v1044 = vadd.f32 %v923, %v1030
    %v1045 = vadd.f32 %v924, %v1033
    %v1046 = vadd.f32 %v925, %v1038
    %v1047 = vadd.f32 %v926, %v1041
    %s1048 = scalar_lea.vmem [#allocation6], 128
    %v1049 = vld [vmem:[%s1048] sm:$0xf]
    %v1050 = vld [vmem:[%s1048 + $0x4] sm:$0xf]
    %v1051 = vld [vmem:[%s1048 + $0x8] sm:$0xf]
    %v1052 = vld [vmem:[%s1048 + $0xc] sm:$0xf]
    %v1055 = vunpack.c.l.b16 %v209
    %v1056 = vunpack.c.l.b16 %v927
    %v1057 = vunpack.c.l.b16 %v212
    %v1058 = vunpack.c.l.b16 %v928
    %v1059 = vpack.c.b16 %v1056, %v1055
    %v1060 = vpack.c.b16 %v1058, %v1057
    %v1065 = vunpack.c.l.b16 %v1049
    %v1066 = vunpack.c.l.b16 %v1050
    %v1067 = vunpack.c.l.b16 %v1051
    %v1068 = vunpack.c.l.b16 %v1052
    %v1069 = vpack.c.b16 %v1066, %v1065
    %v1070 = vpack.c.b16 %v1068, %v1067
    %v1074 = vsel %vm148, %v1059, 0
    %v1077 = vsel %vm148, %v1060, 0
    %1079 = vmatprep.subr.bf16.mxu0 0
    %1080 = vmatpush1.bf16.msra.mxu0 %v1069
    %1081 = vmatprep.subr.bf16.mxu0 0
    %1082 = vmatpush1.bf16.msra.mxu0 %v1070
    %1083 = vmatprep.subr.bf16.mxu0 0
    %1084 = vmatpush1.bf16.msra.mxu0 0
    %1085 = vmatprep.subr.bf16.mxu0 0
    %1086 = vmatpush1.bf16.msra.mxu0 0
    %1087 = vmatprep.subr.bf16.mxu0 0
    %1088 = vmatpush1.bf16.msra.mxu0 0
    %1089 = vmatprep.subr.bf16.mxu0 0
    %1090 = vmatpush1.bf16.msra.mxu0 0
    %1091 = vmatprep.subr.bf16.mxu0 0
    %1092 = vmatpush1.bf16.msra.mxu0 0
    %1093 = vmatprep.subr.bf16.mxu0 0
    %1094 = vmatpush1.bf16.msra.mxu0 0
    %1095 = vmatprep.subr.bf16.mxu0 0
    %1096 = vmatpush1.bf16.msra.mxu0 0
    %1097 = vmatprep.subr.bf16.mxu0 0
    %1098 = vmatpush1.bf16.msra.mxu0 0
    %1099 = vmatprep.subr.bf16.mxu0 0
    %1100 = vmatpush1.bf16.msra.mxu0 0
    %1101 = vmatprep.subr.bf16.mxu0 0
    %1102 = vmatpush1.bf16.msra.mxu0 0
    %1103 = vmatprep.subr.bf16.mxu0 0
    %1104 = vmatpush1.bf16.msra.mxu0 0
    %1105 = vmatprep.subr.bf16.mxu0 0
    %1106 = vmatpush1.bf16.msra.mxu0 0
    %1107 = vmatprep.subr.bf16.mxu0 0
    %1108 = vmatpush1.bf16.msra.mxu0 0
    %1109 = vmatprep.subr.bf16.mxu0 0
    %1110 = vmatpush1.bf16.msra.mxu0 0
    %1111 = vmatprep.mubr.bf16.mxu0 0
    %1112 = vmatmul.mubr.bf16.gmra.mrb[0].mxu0 %v1074
    %v1113 = vpop.f32.mrb[0].mxu0
    %v1114 = vadd.f32 0.0, %v1113
    %v1115 = vpop.f32.mrb[0].mxu0
    %v1116 = vpop.f32.mrb[0].mxu0
    %v1117 = vadd.f32 0.0, %v1116
    %v1118 = vpop.f32.mrb[0].mxu0
    %1119 = vmatprep.mubr.bf16.mxu0 0
    %1120 = vmatmul.mubr.bf16.gmra.mrb[0].mxu0 %v1077
    %v1121 = vpop.f32.mrb[0].mxu0
    %v1122 = vadd.f32 0.0, %v1121
    %v1123 = vpop.f32.mrb[0].mxu0
    %v1124 = vpop.f32.mrb[0].mxu0
    %v1125 = vadd.f32 0.0, %v1124
    %v1126 = vpop.f32.mrb[0].mxu0
    %1127 = vdwg.mxu0
    %v1128 = vadd.f32 %v1044, %v1114
    %v1129 = vadd.f32 %v1045, %v1117
    %v1130 = vadd.f32 %v1046, %v1122
    %v1131 = vadd.f32 %v1047, %v1125
    %vm1132 = vcmp.ne.f32.partialorder %v63, 0.0
    %vm1133 = vcmp.ne.f32.partialorder %v64, 0.0
    %vm1134 = vcmp.ne.f32.partialorder %v65, 0.0
    %vm1135 = vcmp.ne.f32.partialorder %v66, 0.0
    %v1136 = vsel %vm1132, 1, 0
    %v1137 = vsel %vm1133, 1, 0
    %v1138 = vsel %vm1134, 1, 0
    %v1139 = vsel %vm1135, 1, 0
    %1140 = vset.pattern.permute.xlu0 0
    %1141 = vperm.xlu0 %1140, %v1136
    %v1142 = vpop.permute.xlu0 %1141
    %1143 = vset.pattern.permute.xlu0 0
    %1144 = vperm.xlu0 %1143, %v1137
    %v1145 = vpop.permute.xlu0 %1144
    %1146 = vset.pattern.permute.xlu0 0
    %1147 = vperm.xlu0 %1146, %v1138
    %v1148 = vpop.permute.xlu0 %1147
    %1149 = vset.pattern.permute.xlu0 0
    %1150 = vperm.xlu0 %1149, %v1139
    %v1151 = vpop.permute.xlu0 %1150
    %vm1152 = vcmp.eq.s32.totalorder %v1142, 1
    %vm1153 = vcmp.eq.s32.totalorder %v1145, 1
    %vm1154 = vcmp.eq.s32.totalorder %v1148, 1
    %vm1155 = vcmp.eq.s32.totalorder %v1151, 1
    %v1156 = vsel %vm1152, %v1128, -1e+09
    %v1157 = vsel %vm1153, %v1129, -1e+09
    %v1158 = vsel %vm1154, %v1130, -1e+09
    %v1159 = vsel %vm1155, %v1131, -1e+09
    %vm1160 = vcmask 523520
    %v1161 = vsel %vm1160, %v1156, -inf
    %v1162 = vsel %vm1160, %v1157, -inf
    %v1163 = vmax.f32 %v1161, %v1162
    %v1164 = vrot.slane %v1163, 4
    %v1165 = vmax.f32 %v1163, %v1164
    %v1166 = vrot.slane %v1165, 2
    %v1167 = vmax.f32 %v1165, %v1166
    %v1168 = vrot.slane %v1167, 1
    %v1169 = vmax.f32 %v1167, %v1168
    %v1170 = vsel %vm1160, %v1158, -inf
    %v1171 = vsel %vm1160, %v1159, -inf
    %v1172 = vmax.f32 %v1170, %v1171
    %v1173 = vrot.slane %v1172, 4
    %v1174 = vmax.f32 %v1172, %v1173
    %v1175 = vrot.slane %v1174, 2
    %v1176 = vmax.f32 %v1174, %v1175
    %v1177 = vrot.slane %v1176, 1
    %v1178 = vmax.f32 %v1176, %v1177
    %v1179 = vsub.f32 %v1156, %v1169
    %v1180 = vsub.f32 %v1157, %v1169
    %v1181 = vsub.f32 %v1158, %v1178
    %v1182 = vsub.f32 %v1159, %v1178
    %v1183 = vmul.f32 %v1179, 1.442695
    %v1184 = vpow.pop %v1183
    %v1185 = vmul.f32 %v1180, 1.442695
    %v1186 = vpow.pop %v1185
    %v1187 = vmul.f32 %v1181, 1.442695
    %v1188 = vpow.pop %v1187
    %v1189 = vmul.f32 %v1182, 1.442695
    %v1190 = vpow.pop %v1189
    %v1191 = vsel %vm1160, %v1184, 0.0
    %v1192 = vsel %vm1160, %v1186, 0.0
    %v1193 = vadd.f32 %v1191, %v1192
    %v1194 = vrot.slane %v1193, 4
    %v1195 = vadd.f32 %v1193, %v1194
    %v1196 = vrot.slane %v1195, 2
    %v1197 = vadd.f32 %v1195, %v1196
    %v1198 = vrot.slane %v1197, 1
    %v1199 = vadd.f32 %v1197, %v1198
    %v1200 = vsel %vm1160, %v1188, 0.0
    %v1201 = vsel %vm1160, %v1190, 0.0
    %v1202 = vadd.f32 %v1200, %v1201
    %v1203 = vrot.slane %v1202, 4
    %v1204 = vadd.f32 %v1202, %v1203
    %v1205 = vrot.slane %v1204, 2
    %v1206 = vadd.f32 %v1204, %v1205
    %v1207 = vrot.slane %v1206, 1
    %v1208 = vadd.f32 %v1206, %v1207
    %v1209 = vrcp.pop %v1199
    %v1210 = vrcp.pop %v1208
    %1215 = vrot.lane.b32.xlu0 %v1184, 96
    %v1216 = vpop.permute.xlu0 %1215
    %1217 = vrot.lane.b32.xlu0 %v1186, 96
    %v1218 = vpop.permute.xlu0 %1217
    %1219 = vrot.lane.b32.xlu0 %v1188, 96
    %v1220 = vpop.permute.xlu0 %1219
    %1221 = vrot.lane.b32.xlu0 %v1190, 96
    %v1222 = vpop.permute.xlu0 %1221
    %v1227 = vmul.f32 %v1128, %v1216
    %v1228 = vmul.f32 %v1129, %v1218
    %v1229 = vmul.f32 %v1130, %v1220
    %v1230 = vmul.f32 %v1131, %v1222
    %v1231 = vsel %vm148, %v1227, 0.0
    %v1232 = vsel %vm148, %v1228, 0.0
    %v1233 = vadd.f32 %v1231, %v1232
    %v1234 = vrot.slane %v1233, 4
    %v1235 = vadd.f32 %v1233, %v1234
    %v1236 = vrot.slane %v1235, 2
    %v1237 = vadd.f32 %v1235, %v1236
    %v1238 = vrot.slane %v1237, 1
    %v1239 = vadd.f32 %v1237, %v1238
    %v1240 = vsel %vm148, %v1229, 0.0
    %v1241 = vsel %vm148, %v1230, 0.0
    %v1242 = vadd.f32 %v1240, %v1241
    %v1243 = vrot.slane %v1242, 4
    %v1244 = vadd.f32 %v1242, %v1243
    %v1245 = vrot.slane %v1244, 2
    %v1246 = vadd.f32 %v1244, %v1245
    %v1247 = vrot.slane %v1246, 1
    %v1248 = vadd.f32 %v1246, %v1247
    %1251 = vrot.lane.b32.xlu0 %v1209, 96
    %v1252 = vpop.permute.xlu0 %1251
    %1253 = vrot.lane.b32.xlu0 %v1210, 96
    %v1254 = vpop.permute.xlu0 %1253
    %v1257 = vmul.f32 %v1239, %v1252
    %v1258 = vmul.f32 %v1248, %v1254
    %v1259 = vsel %vm148, %v1128, -inf
    %v1260 = vsel %vm148, %v1129, -inf
    %v1261 = vmax.f32 %v1259, %v1260
    %v1262 = vrot.slane %v1261, 4
    %v1263 = vmax.f32 %v1261, %v1262
    %v1264 = vrot.slane %v1263, 2
    %v1265 = vmax.f32 %v1263, %v1264
    %v1266 = vrot.slane %v1265, 1
    %v1267 = vmax.f32 %v1265, %v1266
    %v1268 = vsel %vm148, %v1130, -inf
    %v1269 = vsel %vm148, %v1131, -inf
    %v1270 = vmax.f32 %v1268, %v1269
    %v1271 = vrot.slane %v1270, 4
    %v1272 = vmax.f32 %v1270, %v1271
    %v1273 = vrot.slane %v1272, 2
    %v1274 = vmax.f32 %v1272, %v1273
    %v1275 = vrot.slane %v1274, 1
    %v1276 = vmax.f32 %v1274, %v1275
    %v1277 = vpack.c.bf16 %v1257, %v1257
    %v1278 = vpack.c.bf16 %v1258, %v1258
    %v1279 = vld [vmem:[#allocation8] sm:$0xf]
    %v1280 = vld [vmem:[#allocation8 + $0x4] sm:$0xf]
    %v1281 = vld [vmem:[#allocation8 + $0x8] sm:$0xf]
    %v1282 = vld [vmem:[#allocation8 + $0xc] sm:$0xf]
    %v1283 = vpack.c.bf16 %v1267, %v1267
    %v1284 = vpack.c.bf16 %v1276, %v1276
    %v1285 = vld [vmem:[#allocation8 + $0x10] sm:$0xf]
    %v1286 = vld [vmem:[#allocation8 + $0x14] sm:$0xf]
    %v1287 = vld [vmem:[#allocation8 + $0x18] sm:$0xf]
    %v1288 = vld [vmem:[#allocation8 + $0x1c] sm:$0xf]
    %v1291 = vunpack.c.l.b16 %v1283
    %v1292 = vunpack.c.l.b16 %v1284
    %vm1293 = vcmask 1041409
    %v1294 = vsel %vm1293, %v1292, %v1291
    %v1295 = vpack.c.b16 %v1294, %v1294
    %v1300 = vunpack.c.l.b16 %v1285
    %v1301 = vunpack.c.l.b16 %v1286
    %v1302 = vunpack.c.l.b16 %v1287
    %v1303 = vunpack.c.l.b16 %v1288
    %v1304 = vpack.c.b16 %v1301, %v1300
    %v1305 = vpack.c.b16 %v1303, %v1302
    %v1309 = vsel %vm148, %v1295, 0
    %1311 = vmatprep.subr.bf16.mxu0 0
    %1312 = vmatpush1.bf16.msra.mxu0 %v1304
    %1313 = vmatprep.subr.bf16.mxu0 0
    %1314 = vmatpush1.bf16.msra.mxu0 %v1305
    %1315 = vmatprep.subr.bf16.mxu0 0
    %1316 = vmatpush1.bf16.msra.mxu0 0
    %1317 = vmatprep.subr.bf16.mxu0 0
    %1318 = vmatpush1.bf16.msra.mxu0 0
    %1319 = vmatprep.subr.bf16.mxu0 0
    %1320 = vmatpush1.bf16.msra.mxu0 0
    %1321 = vmatprep.subr.bf16.mxu0 0
    %1322 = vmatpush1.bf16.msra.mxu0 0
    %1323 = vmatprep.subr.bf16.mxu0 0
    %1324 = vmatpush1.bf16.msra.mxu0 0
    %1325 = vmatprep.subr.bf16.mxu0 0
    %1326 = vmatpush1.bf16.msra.mxu0 0
    %1327 = vmatprep.subr.bf16.mxu0 0
    %1328 = vmatpush1.bf16.msra.mxu0 0
    %1329 = vmatprep.subr.bf16.mxu0 0
    %1330 = vmatpush1.bf16.msra.mxu0 0
    %1331 = vmatprep.subr.bf16.mxu0 0
    %1332 = vmatpush1.bf16.msra.mxu0 0
    %1333 = vmatprep.subr.bf16.mxu0 0
    %1334 = vmatpush1.bf16.msra.mxu0 0
    %1335 = vmatprep.subr.bf16.mxu0 0
    %1336 = vmatpush1.bf16.msra.mxu0 0
    %1337 = vmatprep.subr.bf16.mxu0 0
    %1338 = vmatpush1.bf16.msra.mxu0 0
    %1339 = vmatprep.subr.bf16.mxu0 0
    %1340 = vmatpush1.bf16.msra.mxu0 0
    %1341 = vmatprep.subr.bf16.mxu0 0
    %1342 = vmatpush1.bf16.msra.mxu0 0
    %1343 = vmatprep.mubr.bf16.mxu0 0
    %1344 = vmatmul.mubr.bf16.gmra.mrb[0].mxu0 %v1309
    %v1345 = vpop.f32.mrb[0].mxu0
    %v1346 = vadd.f32 0.0, %v1345
    %v1347 = vpop.f32.mrb[0].mxu0
    %v1348 = vpop.f32.mrb[0].mxu0
    %v1349 = vpop.f32.mrb[0].mxu0
    %1350 = vdwg.mxu0
    %v1353 = vunpack.c.l.b16 %v1277
    %v1354 = vunpack.c.l.b16 %v1278
    %v1355 = vrot.slane %v1354, 7
    %v1356 = vsel %vm1293, %v1355, %v1353
    %v1357 = vpack.c.b16 %v1356, %v1356
    %v1362 = vunpack.c.l.b16 %v1279
    %v1363 = vunpack.c.l.b16 %v1280
    %v1364 = vunpack.c.l.b16 %v1281
    %v1365 = vunpack.c.l.b16 %v1282
    %v1366 = vpack.c.b16 %v1363, %v1362
    %v1367 = vpack.c.b16 %v1365, %v1364
    %v1371 = vsel %vm148, %v1357, 0
    %1373 = vmatprep.subr.bf16.mxu0 0
    %1374 = vmatpush1.bf16.msra.mxu0 %v1366
    %1375 = vmatprep.subr.bf16.mxu0 0
    %1376 = vmatpush1.bf16.msra.mxu0 %v1367
    %1377 = vmatprep.subr.bf16.mxu0 0
    %1378 = vmatpush1.bf16.msra.mxu0 0
    %1379 = vmatprep.subr.bf16.mxu0 0
    %1380 = vmatpush1.bf16.msra.mxu0 0
    %1381 = vmatprep.subr.bf16.mxu0 0
    %1382 = vmatpush1.bf16.msra.mxu0 0
    %1383 = vmatprep.subr.bf16.mxu0 0
    %1384 = vmatpush1.bf16.msra.mxu0 0
    %1385 = vmatprep.subr.bf16.mxu0 0
    %1386 = vmatpush1.bf16.msra.mxu0 0
    %1387 = vmatprep.subr.bf16.mxu0 0
    %1388 = vmatpush1.bf16.msra.mxu0 0
    %1389 = vmatprep.subr.bf16.mxu0 0
    %1390 = vmatpush1.bf16.msra.mxu0 0
    %1391 = vmatprep.subr.bf16.mxu0 0
    %1392 = vmatpush1.bf16.msra.mxu0 0
    %1393 = vmatprep.subr.bf16.mxu0 0
    %1394 = vmatpush1.bf16.msra.mxu0 0
    %1395 = vmatprep.subr.bf16.mxu0 0
    %1396 = vmatpush1.bf16.msra.mxu0 0
    %1397 = vmatprep.subr.bf16.mxu0 0
    %1398 = vmatpush1.bf16.msra.mxu0 0
    %1399 = vmatprep.subr.bf16.mxu0 0
    %1400 = vmatpush1.bf16.msra.mxu0 0
    %1401 = vmatprep.subr.bf16.mxu0 0
    %1402 = vmatpush1.bf16.msra.mxu0 0
    %1403 = vmatprep.subr.bf16.mxu0 0
    %1404 = vmatpush1.bf16.msra.mxu0 0
    %1405 = vmatprep.mubr.bf16.mxu0 0
    %1406 = vmatmul.mubr.bf16.gmra.mrb[0].mxu0 %v1371
    %v1407 = vpop.f32.mrb[0].mxu0
    %v1408 = vadd.f32 %v1346, %v1407
    %v1409 = vpop.f32.mrb[0].mxu0
    %v1410 = vpop.f32.mrb[0].mxu0
    %v1411 = vpop.f32.mrb[0].mxu0
    %1412 = vdwg.mxu0
    %v1413 = vld [vmem:[%s4] sm:$0x1]
    %v1415 = vlaneseq
    %v1416 = vshrl.u32 %v1415, 7
    %v1417 = vsub.s32 0, %v1416
    %v1418 = vrot.slane %v1413, %v1417
    %v1420 = vadd.f32 %v1408, %v1418
    %v1421 = vxor.u32 %v1420, 2147483648
    %v1422 = vmul.f32 %v1421, 1.442695
    %v1423 = vpow.pop %v1422
    %v1424 = vadd.f32 %v1423, 1.0
    %v1425 = vrcp.pop %v1424
    %v1426 = vmul.f32 1.0, %v1425
    %1428 = vrot.lane.b32.xlu0 %v1426, 96
    %v1429 = vpop.permute.xlu0 %1428
    %v1431 = vmul.f32 %v1420, %v1429
    %1432 = vst.msk [vmem:[#allocation9] sm:$0x3] %vm67, %v1431
    // Predicated region
    $region34: #{tpu_custom_call.1} parent=1 // pred_check
      _
    $region35: #{tpu_custom_call.1} parent=1 // pred_check_branch
      %1434 = sbr.rel (0) target = $region37
    $region36: #{tpu_custom_call.1} parent=1 // pred_region
      %s1436 = ssub.s32 32, 32
      %1437 = vsyncadd [#allocation5], %s1436
      %s1439 = sshll.u32 [#allocation9], 4
      %s1440 = int_to_ptr.vmem [resolvable:$true] %s1439
      %1442 = dma.vmem_to_hbm [thread:$0]  %s1440, 32, %s5, [#allocation5]
    $region37: #{tpu_custom_call.1} parent=1 // pred_fallthru
      _
    // Predicated region
    $region38: #{tpu_custom_call.1} parent=1 // pred_check
      _
    $region39: #{tpu_custom_call.1} parent=1 // pred_check_branch
      %1444 = sbr.rel (0) target = $region41
    $region40: #{tpu_custom_call.1} parent=1 // pred_region
      %1445 = dma.done [#allocation5], 32
    $region41: #{tpu_custom_call.1} parent=1 // pred_fallthru
      _
    %1446 = vsyncpa [#allocation4], 1
    %1447 = vsyncpa [#allocation7], 1
    %1448 = vsyncpa [#allocation5], 1

</llo_original>
